<compile_context>
chip_gen: v7x
topology: tpu7x:2x2x1
jax: 0.10.0
libtpu: 0.0.40
codegen_flags: <defaults>
</compile_context>

<pallas_src>
import functools
import math

import jax
import jax.numpy as jnp
from jax import lax
from jax.experimental import pallas as pl
from jax.experimental.pallas import tpu as pltpu


# ----------------------------------------------------------------------------
# Pallas kernel: one block of `BB` batch elements per grid step.
# Activations are 2-D (BB*L, channels) rows so every matmul has M = BB*L.
# ----------------------------------------------------------------------------
def mamba_layer_kernel(seq_len, xcat_ref, posxz_ref, wembxz_ref, wconv_ref,
                       bconv_ref, wxproj_ref, bdt_ref, at_ref, dvec_ref,
                       wout_ref, gamma_ref, beta_ref, out_ref):
    f32 = jnp.float32
    bf16 = jnp.bfloat16

    L = seq_len
    N = xcat_ref.shape[0]          # BB * L rows in this block
    BB = N // L
    K = wconv_ref.shape[0]         # depthwise conv taps
    DI = wconv_ref.shape[1]        # d_inner
    S = at_ref.shape[0]            # d_state

    def mm(a, w_ref):              # bf16 MXU inputs, f32 accumulation
        return jnp.dot(a.astype(bf16), w_ref[...], preferred_element_type=f32)

    def silu(v):                   # v * sigmoid(v); divide on the EUP slot
        return v * pl.reciprocal(1.0 + jnp.exp(-v), approx=True)

    def softplus(v):               # numerically stable softplus
        return jnp.where(v > 20.0, v, jnp.log1p(jnp.exp(jnp.minimum(v, 20.0))))

    # ---- fused token-embedding + in_proj (weights folded on the host): ONE MXU hop ----
    xz = mm(xcat_ref[...], wembxz_ref) + posxz_ref[...]     # (N, 2*DI) f32
    xpart = xz[:, :DI]
    z = xz[:, DI:2 * DI]

    # ---- depthwise causal conv (zero left pad) via shifted adds + row mask ----
    rows = lax.broadcasted_iota(jnp.int32, (N, DI), 0)
    row_mod = rows % L                                      # time index within each sequence
    wconv = wconv_ref[...]                                  # (K, DI), read once
    conv = xpart * wconv[K - 1:K, :]                        # tap with shift == 0
    for j in range(K - 1):
        shift = K - 1 - j
        sh = jnp.concatenate(
            [jnp.zeros((shift, DI), f32), xpart[:N - shift, :]], axis=0)
        # mask zero-pads the first `shift` steps and prevents cross-batch leakage
        sh = jnp.where(row_mod >= shift, sh, 0.0)
        conv = conv + sh * wconv[j:j + 1, :]
    conv = conv + bconv_ref[...]
    xs = silu(conv)                                         # (N, DI)

    # ---- fused x_proj + dt_proj: one (DI, DI + 2S) matmul, slice dt / B / C ----
    proj = mm(xs, wxproj_ref)                               # (N, DI + 2S)
    dt = softplus(proj[:, :DI] + bdt_ref[...])              # (N, DI)
    bm = proj[:, DI:DI + S]                                 # (N, S)
    cm = proj[:, DI + S:DI + 2 * S]                         # (N, S)

    # ---- selective scan: batch-vectorized + fully unrolled over L timesteps.
    #      Both per-sequence FMA chains advance in one (BB, S, DI) op per step;
    #      y is folded in incrementally (no stacked h states, no VMEM scratch). ----
    at = at_ref[...]                                        # (S, DI) = A^T
    dt3 = dt.reshape(BB, L, DI)
    dtx3 = (dt * xs).reshape(BB, L, DI)
    bm3 = bm.reshape(BB, L, S)
    cm3 = cm.reshape(BB, L, S)

    h = jnp.zeros((BB, S, DI), f32)
    y = jnp.zeros((N, DI), f32)
    for t in range(L):                                      # static unroll: LLO overlaps
        dA = jnp.exp(dt3[:, t, None, :] * at[None, :, :])   # (BB, S, DI) - off crit path
        dBx = bm3[:, t, :, None] * dtx3[:, t, None, :]      # (BB, S, DI)
        h = dA * h + dBx                                    # the only serial dependence
        y_t = jnp.sum(h * cm3[:, t, :, None], axis=1)       # (BB, DI), sublane reduce (XLU)
        y_bc = jnp.broadcast_to(y_t[:, None, :], (BB, L, DI)).reshape(N, DI)
        y = jnp.where(row_mod == t, y_bc, y)                # place row t of each sequence

    # ---- skip connection, gate, out_proj, LayerNorm ----
    y = y + xs * dvec_ref[...]
    y = y * silu(z)
    o = mm(y, wout_ref)                                     # (N, D)
    mu = jnp.mean(o, axis=1, keepdims=True)
    var = jnp.mean((o - mu) ** 2, axis=1, keepdims=True)
    o = (o - mu) * lax.rsqrt(var + 1e-5)
    o = o * gamma_ref[...] + beta_ref[...]
    out_ref[...] = o.astype(out_ref.dtype)


# ----------------------------------------------------------------------------
# JAX glue
# ----------------------------------------------------------------------------
def positional_embedding(seq_len, d_model):
    pos = jnp.arange(seq_len, dtype=jnp.float32)[:, None]
    div = jnp.exp(jnp.arange(0, d_model, 2, dtype=jnp.float32)
                  * (-math.log(10000.0) / d_model))
    pe = jnp.zeros((seq_len, d_model), jnp.float32)
    pe = pe.at[:, 0::2].set(jnp.sin(pos * div))
    pe = pe.at[:, 1::2].set(jnp.cos(pos * div))
    return pe


def causal_replicate_im2col(x, k):
    # x: (B, L, C) -> (B, L, k*C); column block j holds x[max(t-(k-1)+j, 0)]
    # (equivalent to Conv1d with replicate left padding, truncated to L outputs)
    _, L, _ = x.shape
    cols = []
    for j in range(k):
        shift = k - 1 - j
        idx = jnp.maximum(jnp.arange(L) - shift, 0)
        cols.append(x[:, idx, :])
    return jnp.concatenate(cols, axis=-1)


def init_params(key, c_in, d_model, d_state, d_conv, expand, k_emb):
    d_inner = expand * d_model
    dt_rank = max(1, math.ceil(d_model / 16))
    ks = jax.random.split(key, 10)

    def nrm(k, shape, fan_in):
        return jax.random.normal(k, shape, jnp.float32) / math.sqrt(fan_in)

    w_in_x = nrm(ks[1], (d_model, d_inner), d_model)
    w_in_z = nrm(ks[2], (d_model, d_inner), d_model)
    w_x_dt = nrm(ks[4], (d_inner, dt_rank), d_inner)
    w_x_B = nrm(ks[5], (d_inner, d_state), d_inner)
    w_x_C = nrm(ks[6], (d_inner, d_state), d_inner)
    w_dt = nrm(ks[7], (dt_rank, d_inner), dt_rank)

    a = jnp.tile(jnp.arange(1, d_state + 1, dtype=jnp.float32)[None, :],
                 (d_inner, 1))
    params = dict(
        w_emb=nrm(ks[0], (k_emb * c_in, d_model), k_emb * c_in),
        # fused in_proj (x-branch | z-branch): lane-dense 2*d_inner output
        w_in_xz=jnp.concatenate([w_in_x, w_in_z], axis=1),
        w_conv=nrm(ks[3], (d_conv, d_inner), d_conv),
        b_conv=jnp.zeros((1, d_inner), jnp.float32),
        # fused x_proj + dt_proj: dt_rank bottleneck folded on the host
        w_xproj=jnp.concatenate([w_x_dt @ w_dt, w_x_B, w_x_C], axis=1),
        b_dt=jnp.full((1, d_inner), -3.0, jnp.float32),
        at=(-a).T,                                   # A = -exp(A_log); stored as A^T (S, DI)
        d_vec=jnp.ones((1, d_inner), jnp.float32),
        w_out=nrm(ks[8], (d_inner, d_model), d_inner),
        gamma=jnp.ones((1, d_model), jnp.float32),
        beta=jnp.zeros((1, d_model), jnp.float32),
    )
    return params, d_inner, dt_rank


def _tensorcores_per_chip():
    """Best-effort count of TensorCores one Pallas 'parallel' grid axis can use."""
    try:
        kind = jax.devices()[0].device_kind.lower()
    except Exception:
        return 1
    # v7x exposes two TensorCores per chip; v4 / v5p megacore similarly.
    if any(tag in kind for tag in ("v7", "7x", "v4", "v5p")):
        return 2
    return 1                                          # v5e / v6e: single TensorCore


def mamba_single_layer_forward(x_enc, params, pos_emb, *, d_conv, k_emb,
                               block_b=None):
    B, L, c_in = x_enc.shape
    d_model = params["w_emb"].shape[1]
    d_inner = params["w_conv"].shape[1]
    d_state = params["at"].shape[0]
    kc = k_emb * c_in

    if block_b is None:
        ncores = _tensorcores_per_chip()
        block_b = B // ncores if (ncores > 1 and B % ncores == 0) else B
    assert B % block_b == 0
    n = block_b * L
    assert n % 8 == 0, "block rows must be a multiple of 8 (sublane tiling)"

    x_cat = causal_replicate_im2col(x_enc, k_emb).reshape(B * L, kc)

    bf16 = jnp.bfloat16
    # Host-folded weights: token-embedding conv folded into in_proj (one MXU hop),
    # positional embedding pre-projected and pre-tiled, x_proj+dt_proj fused.
    w_embxz = (params["w_emb"] @ params["w_in_xz"]).astype(bf16)   # (kc, 2*d_inner)
    pos_xz = jnp.tile(pos_emb @ params["w_in_xz"], (B, 1))         # (B*L, 2*d_inner) f32
    w_xproj = params["w_xproj"].astype(bf16)
    w_out = params["w_out"].astype(bf16)

    def full(shape):
        return pl.BlockSpec(shape, lambda i: (0, 0))

    in_specs = [
        pl.BlockSpec((n, kc), lambda i: (i, 0)),          # im2col rows for this block
        pl.BlockSpec((n, 2 * d_inner), lambda i: (i, 0)),  # pos_emb @ in_proj (pre-tiled)
        full((kc, 2 * d_inner)),                          # w_emb @ in_proj (bf16)
        full((d_conv, d_inner)),                          # depthwise conv weight
        full((1, d_inner)),                               # conv bias
        full((d_inner, d_inner + 2 * d_state)),           # fused x_proj/dt_proj (bf16)
        full((1, d_inner)),                               # dt bias
        full((d_state, d_inner)),                         # A^T
        full((1, d_inner)),                               # D skip vector
        full((d_inner, d_model)),                         # out_proj (bf16)
        full((1, d_model)),                               # LayerNorm gamma
        full((1, d_model)),                               # LayerNorm beta
    ]

    out = pl.pallas_call(
        functools.partial(mamba_layer_kernel, L),
        out_shape=jax.ShapeDtypeStruct((B * L, d_model), jnp.float32),
        grid=(B // block_b,),
        in_specs=in_specs,
        out_specs=pl.BlockSpec((n, d_model), lambda i: (i, 0)),
        compiler_params=pltpu.CompilerParams(
            dimension_semantics=("parallel",)),           # batch blocks -> both TCs on v7x
    )(x_cat, pos_xz, w_embxz, params["w_conv"], params["b_conv"],
      w_xproj, params["b_dt"], params["at"], params["d_vec"], w_out,
      params["gamma"], params["beta"])
    return out.reshape(B, L, d_model)


# ----------------------------------------------------------------------------
# Pure-JAX reference mirroring the kernel math (host-folded weights, bf16 MXU
# inputs, f32 elsewhere, exact sigmoid) for validation.
# ----------------------------------------------------------------------------
def reference_forward(x_enc, params, pos_emb, *, d_conv, k_emb):
    B, L, _ = x_enc.shape
    d_model = params["w_emb"].shape[1]
    DI = params["w_conv"].shape[1]
    S = params["at"].shape[0]
    K = d_conv

    def mm(a, b):
        return jnp.dot(a.astype(jnp.bfloat16), b.astype(jnp.bfloat16),
                       preferred_element_type=jnp.float32)

    def softplus(v):
        return jnp.where(v > 20.0, v, jnp.log1p(jnp.exp(jnp.minimum(v, 20.0))))

    x_cat = causal_replicate_im2col(x_enc, k_emb).reshape(B * L, -1)
    w_embxz = params["w_emb"] @ params["w_in_xz"]
    pos_xz = jnp.tile(pos_emb @ params["w_in_xz"], (B, 1))
    xz = mm(x_cat, w_embxz) + pos_xz
    xpart, z = xz[:, :DI], xz[:, DI:]

    xp3 = xpart.reshape(B, L, DI)
    conv = jnp.zeros_like(xp3)
    for j in range(K):
        shift = K - 1 - j
        shifted = jnp.pad(xp3, ((0, 0), (shift, 0), (0, 0)))[:, :L, :]
        conv = conv + shifted * params["w_conv"][j][None, None, :]
    conv = (conv + params["b_conv"][None]).reshape(B * L, DI)
    xs = conv * jax.nn.sigmoid(conv)

    proj = mm(xs, params["w_xproj"])
    dt = softplus(proj[:, :DI] + params["b_dt"])
    bm, cm = proj[:, DI:DI + S], proj[:, DI + S:]

    at = params["at"]                                       # (S, DI)
    dt3, xs3 = dt.reshape(B, L, DI), xs.reshape(B, L, DI)
    bm3, cm3 = bm.reshape(B, L, S), cm.reshape(B, L, S)
    h = jnp.zeros((B, S, DI), jnp.float32)
    ys = []
    for t in range(L):
        dA = jnp.exp(dt3[:, t, None, :] * at[None])
        dBx = bm3[:, t, :, None] * (dt3[:, t, None, :] * xs3[:, t, None, :])
        h = dA * h + dBx
        ys.append(jnp.sum(h * cm3[:, t, :, None], axis=1))
    y = jnp.stack(ys, axis=1).reshape(B * L, DI)

    y = y + xs * params["d_vec"]
    y = y * (z * jax.nn.sigmoid(z))
    o = mm(y, params["w_out"])
    mu = o.mean(1, keepdims=True)
    var = ((o - mu) ** 2).mean(1, keepdims=True)
    o = (o - mu) / jnp.sqrt(var + 1e-5)
    return (o * params["gamma"] + params["beta"]).reshape(B, L, d_model)


# ----------------------------------------------------------------------------
if __name__ == "__main__":
    # config (anomaly_detection branch): embedding -> Mamba -> LayerNorm
    batch, seq_len, enc_in = 2, 8, 4
    d_model, d_state, d_conv, expand, k_emb = 32, 16, 4, 2, 3

    key = jax.random.PRNGKey(0)
    k_p, k_x = jax.random.split(key)
    params, d_inner, dt_rank = init_params(
        k_p, enc_in, d_model, d_state, d_conv, expand, k_emb)
    pos_emb = positional_embedding(seq_len, d_model)

    x_enc = jax.random.normal(k_x, (batch, seq_len, enc_in), jnp.float32)

    out = mamba_single_layer_forward(x_enc, params, pos_emb,
                                     d_conv=d_conv, k_emb=k_emb)
    out = jax.block_until_ready(out)

    ref = reference_forward(x_enc, params, pos_emb, d_conv=d_conv, k_emb=k_emb)
    err = float(jnp.max(jnp.abs(out - ref)))
    # Tolerance accounts for the EUP approximate reciprocal in SiLU and matmul
    # accumulation-order differences (kernel and reference both use bf16 MXU inputs).
    assert err < 5e-2, f"max abs error vs reference: {err}"
    print("KERNEL_OK")
</pallas_src>

<mosaic_0001>
module attributes {stable_mosaic.version = 11 : i64} {
  func.func @mamba_layer_kernel(%arg0: i32, %arg1: memref<16x12xf32, #tpu.memory_space<vmem>>, %arg2: memref<16x128xf32, #tpu.memory_space<vmem>>, %arg3: memref<12x128xbf16, #tpu.memory_space<vmem>>, %arg4: memref<4x64xf32, #tpu.memory_space<vmem>>, %arg5: memref<1x64xf32, #tpu.memory_space<vmem>>, %arg6: memref<64x96xbf16, #tpu.memory_space<vmem>>, %arg7: memref<1x64xf32, #tpu.memory_space<vmem>>, %arg8: memref<16x64xf32, #tpu.memory_space<vmem>>, %arg9: memref<1x64xf32, #tpu.memory_space<vmem>>, %arg10: memref<64x32xbf16, #tpu.memory_space<vmem>>, %arg11: memref<1x32xf32, #tpu.memory_space<vmem>>, %arg12: memref<1x32xf32, #tpu.memory_space<vmem>>, %arg13: memref<16x32xf32, #tpu.memory_space<vmem>>) attributes {dimension_semantics = [#tpu.dimension_semantics<parallel>], iteration_bounds = array<i64: 1>, scalar_prefetch = 0 : i64, scratch_operands = 0 : i64, tpu.core_type = #tpu.core_type<tc>, window_params = [{transform_indices = @transform_0, window_bounds = array<i64: 16, 12>}, {transform_indices = @transform_1, window_bounds = array<i64: 16, 128>}, {pipeline_mode = #tpu.pipeline_mode<synchronous>, transform_indices = @transform_2, window_bounds = array<i64: 12, 128>}, {pipeline_mode = #tpu.pipeline_mode<synchronous>, transform_indices = @transform_3, window_bounds = array<i64: 4, 64>}, {pipeline_mode = #tpu.pipeline_mode<synchronous>, transform_indices = @transform_4, window_bounds = array<i64: 1, 64>}, {pipeline_mode = #tpu.pipeline_mode<synchronous>, transform_indices = @transform_5, window_bounds = array<i64: 64, 96>}, {pipeline_mode = #tpu.pipeline_mode<synchronous>, transform_indices = @transform_6, window_bounds = array<i64: 1, 64>}, {pipeline_mode = #tpu.pipeline_mode<synchronous>, transform_indices = @transform_7, window_bounds = array<i64: 16, 64>}, {pipeline_mode = #tpu.pipeline_mode<synchronous>, transform_indices = @transform_8, window_bounds = array<i64: 1, 64>}, {pipeline_mode = #tpu.pipeline_mode<synchronous>, transform_indices = @transform_9, window_bounds = array<i64: 64, 32>}, {pipeline_mode = #tpu.pipeline_mode<synchronous>, transform_indices = @transform_10, window_bounds = array<i64: 1, 32>}, {pipeline_mode = #tpu.pipeline_mode<synchronous>, transform_indices = @transform_11, window_bounds = array<i64: 1, 32>}, {transform_indices = @transform_12, window_bounds = array<i64: 16, 32>}]} {
    %c0 = arith.constant 0 : index
    %c0_0 = arith.constant 0 : index
    %0 = vector.load %arg1[%c0, %c0_0] : memref<16x12xf32, #tpu.memory_space<vmem>>, vector<16x12xf32>
    %1 = arith.truncf %0 : vector<16x12xf32> to vector<16x12xbf16>
    %c0_1 = arith.constant 0 : index
    %c0_2 = arith.constant 0 : index
    %2 = vector.load %arg3[%c0_1, %c0_2] : memref<12x128xbf16, #tpu.memory_space<vmem>>, vector<12x128xbf16>
    %cst = arith.constant dense<0.000000e+00> : vector<16x128xf32>
    %3 = tpu.matmul %1, %2, %cst {dimension_numbers = #tpu.dot_dimension_numbers<[1], [0], [0], [1], [0, 0, 1, 1], [], []>} : vector<16x12xbf16>, vector<12x128xbf16>, vector<16x128xf32> -> vector<16x128xf32>
    %c0_3 = arith.constant 0 : index
    %c0_4 = arith.constant 0 : index
    %4 = vector.load %arg2[%c0_3, %c0_4] : memref<16x128xf32, #tpu.memory_space<vmem>>, vector<16x128xf32>
    %5 = arith.addf %3, %4 : vector<16x128xf32>
    %6 = vector.extract_strided_slice %5 {offsets = [0, 0], sizes = [16, 64], strides = [1, 1]} : vector<16x128xf32> to vector<16x64xf32>
    %7 = vector.extract_strided_slice %5 {offsets = [0, 64], sizes = [16, 64], strides = [1, 1]} : vector<16x128xf32> to vector<16x64xf32>
    %8 = tpu.iota {dimensions = array<i32: 0>} : vector<16x64xi32>
    %c8_i32 = arith.constant 8 : i32
    %c0_i32 = arith.constant 0 : i32
    %9 = arith.cmpi eq, %c8_i32, %c0_i32 : i32
    %c1_i32 = arith.constant 1 : i32
    %10 = arith.select %9, %c1_i32, %c8_i32 : i32
    %11 = vector.broadcast %10 : i32 to vector<16x64xi32>
    %12 = arith.remsi %8, %11 : vector<16x64xi32>
    %c0_i32_5 = arith.constant 0 : i32
    %13 = vector.broadcast %c0_i32_5 : i32 to vector<16x64xi32>
    %14 = arith.cmpi ne, %12, %13 : vector<16x64xi32>
    %c0_i32_6 = arith.constant 0 : i32
    %15 = vector.broadcast %c0_i32_6 : i32 to vector<16x64xi32>
    %16 = arith.cmpi slt, %12, %15 : vector<16x64xi32>
    %c0_i32_7 = arith.constant 0 : i32
    %17 = arith.cmpi slt, %10, %c0_i32_7 : i32
    %18 = vector.broadcast %17 : i1 to vector<16x64xi1>
    %19 = vector.broadcast %18 : vector<16x64xi1> to vector<16x64xi1>
    %20 = arith.xori %16, %19 : vector<16x64xi1>
    %21 = arith.andi %20, %14 : vector<16x64xi1>
    %22 = vector.broadcast %10 : i32 to vector<16x64xi32>
    %23 = arith.addi %12, %22 : vector<16x64xi32>
    %24 = arith.select %21, %23, %12 : vector<16x64xi1>, vector<16x64xi32>
    %c0_8 = arith.constant 0 : index
    %c0_9 = arith.constant 0 : index
    %25 = vector.load %arg4[%c0_8, %c0_9] : memref<4x64xf32, #tpu.memory_space<vmem>>, vector<4x64xf32>
    %26 = vector.extract_strided_slice %25 {offsets = [3, 0], sizes = [1, 64], strides = [1, 1]} : vector<4x64xf32> to vector<1x64xf32>
    %27 = vector.broadcast %26 : vector<1x64xf32> to vector<16x64xf32>
    %28 = arith.mulf %6, %27 : vector<16x64xf32>
    %cst_10 = arith.constant 0.000000e+00 : f32
    %29 = vector.broadcast %cst_10 : f32 to vector<3x64xf32>
    %30 = vector.extract_strided_slice %6 {offsets = [0, 0], sizes = [13, 64], strides = [1, 1]} : vector<16x64xf32> to vector<13x64xf32>
    %31 = tpu.concatenate %29, %30 in 0 : vector<3x64xf32>, vector<13x64xf32> -> vector<16x64xf32>
    %c3_i32 = arith.constant 3 : i32
    %32 = vector.broadcast %c3_i32 : i32 to vector<16x64xi32>
    %33 = arith.cmpi sge, %24, %32 : vector<16x64xi32>
    %cst_11 = arith.constant 0.000000e+00 : f32
    %34 = vector.broadcast %cst_11 : f32 to vector<16x64xf32>
    %35 = arith.select %33, %31, %34 : vector<16x64xi1>, vector<16x64xf32>
    %36 = vector.extract_strided_slice %25 {offsets = [0, 0], sizes = [1, 64], strides = [1, 1]} : vector<4x64xf32> to vector<1x64xf32>
    %37 = vector.broadcast %36 : vector<1x64xf32> to vector<16x64xf32>
    %38 = arith.mulf %35, %37 : vector<16x64xf32>
    %39 = arith.addf %28, %38 : vector<16x64xf32>
    %cst_12 = arith.constant 0.000000e+00 : f32
    %40 = vector.broadcast %cst_12 : f32 to vector<2x64xf32>
    %41 = vector.extract_strided_slice %6 {offsets = [0, 0], sizes = [14, 64], strides = [1, 1]} : vector<16x64xf32> to vector<14x64xf32>
    %42 = tpu.concatenate %40, %41 in 0 : vector<2x64xf32>, vector<14x64xf32> -> vector<16x64xf32>
    %c2_i32 = arith.constant 2 : i32
    %43 = vector.broadcast %c2_i32 : i32 to vector<16x64xi32>
    %44 = arith.cmpi sge, %24, %43 : vector<16x64xi32>
    %cst_13 = arith.constant 0.000000e+00 : f32
    %45 = vector.broadcast %cst_13 : f32 to vector<16x64xf32>
    %46 = arith.select %44, %42, %45 : vector<16x64xi1>, vector<16x64xf32>
    %47 = vector.extract_strided_slice %25 {offsets = [1, 0], sizes = [1, 64], strides = [1, 1]} : vector<4x64xf32> to vector<1x64xf32>
    %48 = vector.broadcast %47 : vector<1x64xf32> to vector<16x64xf32>
    %49 = arith.mulf %46, %48 : vector<16x64xf32>
    %50 = arith.addf %39, %49 : vector<16x64xf32>
    %cst_14 = arith.constant 0.000000e+00 : f32
    %51 = vector.broadcast %cst_14 : f32 to vector<1x64xf32>
    %52 = vector.extract_strided_slice %6 {offsets = [0, 0], sizes = [15, 64], strides = [1, 1]} : vector<16x64xf32> to vector<15x64xf32>
    %53 = tpu.concatenate %51, %52 in 0 : vector<1x64xf32>, vector<15x64xf32> -> vector<16x64xf32>
    %c1_i32_15 = arith.constant 1 : i32
    %54 = vector.broadcast %c1_i32_15 : i32 to vector<16x64xi32>
    %55 = arith.cmpi sge, %24, %54 : vector<16x64xi32>
    %cst_16 = arith.constant 0.000000e+00 : f32
    %56 = vector.broadcast %cst_16 : f32 to vector<16x64xf32>
    %57 = arith.select %55, %53, %56 : vector<16x64xi1>, vector<16x64xf32>
    %58 = vector.extract_strided_slice %25 {offsets = [2, 0], sizes = [1, 64], strides = [1, 1]} : vector<4x64xf32> to vector<1x64xf32>
    %59 = vector.broadcast %58 : vector<1x64xf32> to vector<16x64xf32>
    %60 = arith.mulf %57, %59 : vector<16x64xf32>
    %61 = arith.addf %50, %60 : vector<16x64xf32>
    %c0_17 = arith.constant 0 : index
    %c0_18 = arith.constant 0 : index
    %62 = vector.load %arg5[%c0_17, %c0_18] : memref<1x64xf32, #tpu.memory_space<vmem>>, vector<1x64xf32>
    %63 = vector.broadcast %62 : vector<1x64xf32> to vector<16x64xf32>
    %64 = arith.addf %61, %63 : vector<16x64xf32>
    %cst_19 = arith.constant 0.000000e+00 : f32
    %65 = vector.broadcast %cst_19 : f32 to vector<16x64xf32>
    %66 = arith.subf %65, %64 : vector<16x64xf32>
    %67 = math.exp %66 : vector<16x64xf32>
    %cst_20 = arith.constant 1.000000e+00 : f32
    %68 = vector.broadcast %cst_20 : f32 to vector<16x64xf32>
    %69 = arith.addf %68, %67 : vector<16x64xf32>
    %70 = tpu.reciprocal %69 {approx = true} : vector<16x64xf32> -> vector<16x64xf32>
    %71 = arith.mulf %64, %70 : vector<16x64xf32>
    %72 = arith.truncf %71 : vector<16x64xf32> to vector<16x64xbf16>
    %c0_21 = arith.constant 0 : index
    %c0_22 = arith.constant 0 : index
    %73 = vector.load %arg6[%c0_21, %c0_22] : memref<64x96xbf16, #tpu.memory_space<vmem>>, vector<64x96xbf16>
    %cst_23 = arith.constant dense<0.000000e+00> : vector<16x96xf32>
    %74 = tpu.matmul %72, %73, %cst_23 {dimension_numbers = #tpu.dot_dimension_numbers<[1], [0], [0], [1], [0, 0, 1, 1], [], []>} : vector<16x64xbf16>, vector<64x96xbf16>, vector<16x96xf32> -> vector<16x96xf32>
    %75 = vector.extract_strided_slice %74 {offsets = [0, 0], sizes = [16, 64], strides = [1, 1]} : vector<16x96xf32> to vector<16x64xf32>
    %c0_24 = arith.constant 0 : index
    %c0_25 = arith.constant 0 : index
    %76 = vector.load %arg7[%c0_24, %c0_25] : memref<1x64xf32, #tpu.memory_space<vmem>>, vector<1x64xf32>
    %77 = vector.broadcast %76 : vector<1x64xf32> to vector<16x64xf32>
    %78 = arith.addf %75, %77 : vector<16x64xf32>
    %cst_26 = arith.constant 2.000000e+01 : f32
    %79 = vector.broadcast %cst_26 : f32 to vector<16x64xf32>
    %80 = arith.cmpf ogt, %78, %79 : vector<16x64xf32>
    %cst_27 = arith.constant 2.000000e+01 : f32
    %81 = vector.broadcast %cst_27 : f32 to vector<16x64xf32>
    %82 = arith.minimumf %78, %81 : vector<16x64xf32>
    %83 = math.exp %82 : vector<16x64xf32>
    %84 = math.log1p %83 : vector<16x64xf32>
    %85 = arith.select %80, %78, %84 : vector<16x64xi1>, vector<16x64xf32>
    %86 = vector.extract_strided_slice %74 {offsets = [0, 64], sizes = [16, 16], strides = [1, 1]} : vector<16x96xf32> to vector<16x16xf32>
    %87 = vector.extract_strided_slice %74 {offsets = [0, 80], sizes = [16, 16], strides = [1, 1]} : vector<16x96xf32> to vector<16x16xf32>
    %c0_28 = arith.constant 0 : index
    %c0_29 = arith.constant 0 : index
    %88 = vector.load %arg8[%c0_28, %c0_29] : memref<16x64xf32, #tpu.memory_space<vmem>>, vector<16x64xf32>
    %89 = vector.shape_cast %85 : vector<16x64xf32> to vector<2x8x64xf32>
    %90 = arith.mulf %85, %71 : vector<16x64xf32>
    %91 = vector.shape_cast %90 : vector<16x64xf32> to vector<2x8x64xf32>
    %92 = vector.shape_cast %86 : vector<16x16xf32> to vector<2x8x16xf32>
    %93 = vector.shape_cast %87 : vector<16x16xf32> to vector<2x8x16xf32>
    %cst_30 = arith.constant 0.000000e+00 : f32
    %94 = vector.broadcast %cst_30 : f32 to vector<2x16x64xf32>
    %cst_31 = arith.constant 0.000000e+00 : f32
    %95 = vector.broadcast %cst_31 : f32 to vector<16x64xf32>
    %96 = vector.extract_strided_slice %89 {offsets = [0, 0, 0], sizes = [2, 1, 64], strides = [1, 1, 1]} : vector<2x8x64xf32> to vector<2x1x64xf32>
    %97 = vector.shape_cast %96 : vector<2x1x64xf32> to vector<2x64xf32>
    %98 = vector.shape_cast %97 : vector<2x64xf32> to vector<2x1x64xf32>
    %99 = vector.shape_cast %88 : vector<16x64xf32> to vector<1x16x64xf32>
    %100 = vector.broadcast %98 : vector<2x1x64xf32> to vector<2x16x64xf32>
    %101 = vector.broadcast %99 : vector<1x16x64xf32> to vector<2x16x64xf32>
    %102 = arith.mulf %100, %101 : vector<2x16x64xf32>
    %103 = math.exp %102 : vector<2x16x64xf32>
    %104 = vector.extract_strided_slice %92 {offsets = [0, 0, 0], sizes = [2, 1, 16], strides = [1, 1, 1]} : vector<2x8x16xf32> to vector<2x1x16xf32>
    %105 = vector.shape_cast %104 : vector<2x1x16xf32> to vector<2x16xf32>
    %106 = vector.shape_cast %105 : vector<2x16xf32> to vector<2x16x1xf32>
    %107 = vector.extract_strided_slice %91 {offsets = [0, 0, 0], sizes = [2, 1, 64], strides = [1, 1, 1]} : vector<2x8x64xf32> to vector<2x1x64xf32>
    %108 = vector.shape_cast %107 : vector<2x1x64xf32> to vector<2x64xf32>
    %109 = vector.shape_cast %108 : vector<2x64xf32> to vector<2x1x64xf32>
    %110 = vector.broadcast %106 : vector<2x16x1xf32> to vector<2x16x64xf32>
    %111 = vector.broadcast %109 : vector<2x1x64xf32> to vector<2x16x64xf32>
    %112 = arith.mulf %110, %111 : vector<2x16x64xf32>
    %113 = arith.mulf %103, %94 : vector<2x16x64xf32>
    %114 = arith.addf %113, %112 : vector<2x16x64xf32>
    %115 = vector.extract_strided_slice %93 {offsets = [0, 0, 0], sizes = [2, 1, 16], strides = [1, 1, 1]} : vector<2x8x16xf32> to vector<2x1x16xf32>
    %116 = vector.shape_cast %115 : vector<2x1x16xf32> to vector<2x16xf32>
    %117 = vector.shape_cast %116 : vector<2x16xf32> to vector<2x16x1xf32>
    %118 = vector.broadcast %117 : vector<2x16x1xf32> to vector<2x16x64xf32>
    %119 = arith.mulf %114, %118 : vector<2x16x64xf32>
    %cst_32 = arith.constant dense<0.000000e+00> : vector<2x64xf32>
    %120 = vector.multi_reduction <add>, %119, %cst_32 [1] : vector<2x16x64xf32> to vector<2x64xf32>
    %121 = vector.shape_cast %120 : vector<2x64xf32> to vector<2x1x64xf32>
    %122 = vector.shape_cast %121 : vector<2x1x64xf32> to vector<2x1x64xf32>
    %123 = vector.broadcast %122 : vector<2x1x64xf32> to vector<2x8x64xf32>
    %124 = vector.shape_cast %123 : vector<2x8x64xf32> to vector<16x64xf32>
    %c0_i32_33 = arith.constant 0 : i32
    %125 = vector.broadcast %c0_i32_33 : i32 to vector<16x64xi32>
    %126 = arith.cmpi eq, %24, %125 : vector<16x64xi32>
    %127 = arith.select %126, %124, %95 : vector<16x64xi1>, vector<16x64xf32>
    %128 = vector.extract_strided_slice %89 {offsets = [0, 1, 0], sizes = [2, 1, 64], strides = [1, 1, 1]} : vector<2x8x64xf32> to vector<2x1x64xf32>
    %129 = vector.shape_cast %128 : vector<2x1x64xf32> to vector<2x64xf32>
    %130 = vector.shape_cast %129 : vector<2x64xf32> to vector<2x1x64xf32>
    %131 = vector.shape_cast %88 : vector<16x64xf32> to vector<1x16x64xf32>
    %132 = vector.broadcast %130 : vector<2x1x64xf32> to vector<2x16x64xf32>
    %133 = vector.broadcast %131 : vector<1x16x64xf32> to vector<2x16x64xf32>
    %134 = arith.mulf %132, %133 : vector<2x16x64xf32>
    %135 = math.exp %134 : vector<2x16x64xf32>
    %136 = vector.extract_strided_slice %92 {offsets = [0, 1, 0], sizes = [2, 1, 16], strides = [1, 1, 1]} : vector<2x8x16xf32> to vector<2x1x16xf32>
    %137 = vector.shape_cast %136 : vector<2x1x16xf32> to vector<2x16xf32>
    %138 = vector.shape_cast %137 : vector<2x16xf32> to vector<2x16x1xf32>
    %139 = vector.extract_strided_slice %91 {offsets = [0, 1, 0], sizes = [2, 1, 64], strides = [1, 1, 1]} : vector<2x8x64xf32> to vector<2x1x64xf32>
    %140 = vector.shape_cast %139 : vector<2x1x64xf32> to vector<2x64xf32>
    %141 = vector.shape_cast %140 : vector<2x64xf32> to vector<2x1x64xf32>
    %142 = vector.broadcast %138 : vector<2x16x1xf32> to vector<2x16x64xf32>
    %143 = vector.broadcast %141 : vector<2x1x64xf32> to vector<2x16x64xf32>
    %144 = arith.mulf %142, %143 : vector<2x16x64xf32>
    %145 = arith.mulf %135, %114 : vector<2x16x64xf32>
    %146 = arith.addf %145, %144 : vector<2x16x64xf32>
    %147 = vector.extract_strided_slice %93 {offsets = [0, 1, 0], sizes = [2, 1, 16], strides = [1, 1, 1]} : vector<2x8x16xf32> to vector<2x1x16xf32>
    %148 = vector.shape_cast %147 : vector<2x1x16xf32> to vector<2x16xf32>
    %149 = vector.shape_cast %148 : vector<2x16xf32> to vector<2x16x1xf32>
    %150 = vector.broadcast %149 : vector<2x16x1xf32> to vector<2x16x64xf32>
    %151 = arith.mulf %146, %150 : vector<2x16x64xf32>
    %cst_34 = arith.constant dense<0.000000e+00> : vector<2x64xf32>
    %152 = vector.multi_reduction <add>, %151, %cst_34 [1] : vector<2x16x64xf32> to vector<2x64xf32>
    %153 = vector.shape_cast %152 : vector<2x64xf32> to vector<2x1x64xf32>
    %154 = vector.shape_cast %153 : vector<2x1x64xf32> to vector<2x1x64xf32>
    %155 = vector.broadcast %154 : vector<2x1x64xf32> to vector<2x8x64xf32>
    %156 = vector.shape_cast %155 : vector<2x8x64xf32> to vector<16x64xf32>
    %c1_i32_35 = arith.constant 1 : i32
    %157 = vector.broadcast %c1_i32_35 : i32 to vector<16x64xi32>
    %158 = arith.cmpi eq, %24, %157 : vector<16x64xi32>
    %159 = arith.select %158, %156, %127 : vector<16x64xi1>, vector<16x64xf32>
    %160 = vector.extract_strided_slice %89 {offsets = [0, 2, 0], sizes = [2, 1, 64], strides = [1, 1, 1]} : vector<2x8x64xf32> to vector<2x1x64xf32>
    %161 = vector.shape_cast %160 : vector<2x1x64xf32> to vector<2x64xf32>
    %162 = vector.shape_cast %161 : vector<2x64xf32> to vector<2x1x64xf32>
    %163 = vector.shape_cast %88 : vector<16x64xf32> to vector<1x16x64xf32>
    %164 = vector.broadcast %162 : vector<2x1x64xf32> to vector<2x16x64xf32>
    %165 = vector.broadcast %163 : vector<1x16x64xf32> to vector<2x16x64xf32>
    %166 = arith.mulf %164, %165 : vector<2x16x64xf32>
    %167 = math.exp %166 : vector<2x16x64xf32>
    %168 = vector.extract_strided_slice %92 {offsets = [0, 2, 0], sizes = [2, 1, 16], strides = [1, 1, 1]} : vector<2x8x16xf32> to vector<2x1x16xf32>
    %169 = vector.shape_cast %168 : vector<2x1x16xf32> to vector<2x16xf32>
    %170 = vector.shape_cast %169 : vector<2x16xf32> to vector<2x16x1xf32>
    %171 = vector.extract_strided_slice %91 {offsets = [0, 2, 0], sizes = [2, 1, 64], strides = [1, 1, 1]} : vector<2x8x64xf32> to vector<2x1x64xf32>
    %172 = vector.shape_cast %171 : vector<2x1x64xf32> to vector<2x64xf32>
    %173 = vector.shape_cast %172 : vector<2x64xf32> to vector<2x1x64xf32>
    %174 = vector.broadcast %170 : vector<2x16x1xf32> to vector<2x16x64xf32>
    %175 = vector.broadcast %173 : vector<2x1x64xf32> to vector<2x16x64xf32>
    %176 = arith.mulf %174, %175 : vector<2x16x64xf32>
    %177 = arith.mulf %167, %146 : vector<2x16x64xf32>
    %178 = arith.addf %177, %176 : vector<2x16x64xf32>
    %179 = vector.extract_strided_slice %93 {offsets = [0, 2, 0], sizes = [2, 1, 16], strides = [1, 1, 1]} : vector<2x8x16xf32> to vector<2x1x16xf32>
    %180 = vector.shape_cast %179 : vector<2x1x16xf32> to vector<2x16xf32>
    %181 = vector.shape_cast %180 : vector<2x16xf32> to vector<2x16x1xf32>
    %182 = vector.broadcast %181 : vector<2x16x1xf32> to vector<2x16x64xf32>
    %183 = arith.mulf %178, %182 : vector<2x16x64xf32>
    %cst_36 = arith.constant dense<0.000000e+00> : vector<2x64xf32>
    %184 = vector.multi_reduction <add>, %183, %cst_36 [1] : vector<2x16x64xf32> to vector<2x64xf32>
    %185 = vector.shape_cast %184 : vector<2x64xf32> to vector<2x1x64xf32>
    %186 = vector.shape_cast %185 : vector<2x1x64xf32> to vector<2x1x64xf32>
    %187 = vector.broadcast %186 : vector<2x1x64xf32> to vector<2x8x64xf32>
    %188 = vector.shape_cast %187 : vector<2x8x64xf32> to vector<16x64xf32>
    %c2_i32_37 = arith.constant 2 : i32
    %189 = vector.broadcast %c2_i32_37 : i32 to vector<16x64xi32>
    %190 = arith.cmpi eq, %24, %189 : vector<16x64xi32>
    %191 = arith.select %190, %188, %159 : vector<16x64xi1>, vector<16x64xf32>
    %192 = vector.extract_strided_slice %89 {offsets = [0, 3, 0], sizes = [2, 1, 64], strides = [1, 1, 1]} : vector<2x8x64xf32> to vector<2x1x64xf32>
    %193 = vector.shape_cast %192 : vector<2x1x64xf32> to vector<2x64xf32>
    %194 = vector.shape_cast %193 : vector<2x64xf32> to vector<2x1x64xf32>
    %195 = vector.shape_cast %88 : vector<16x64xf32> to vector<1x16x64xf32>
    %196 = vector.broadcast %194 : vector<2x1x64xf32> to vector<2x16x64xf32>
    %197 = vector.broadcast %195 : vector<1x16x64xf32> to vector<2x16x64xf32>
    %198 = arith.mulf %196, %197 : vector<2x16x64xf32>
    %199 = math.exp %198 : vector<2x16x64xf32>
    %200 = vector.extract_strided_slice %92 {offsets = [0, 3, 0], sizes = [2, 1, 16], strides = [1, 1, 1]} : vector<2x8x16xf32> to vector<2x1x16xf32>
    %201 = vector.shape_cast %200 : vector<2x1x16xf32> to vector<2x16xf32>
    %202 = vector.shape_cast %201 : vector<2x16xf32> to vector<2x16x1xf32>
    %203 = vector.extract_strided_slice %91 {offsets = [0, 3, 0], sizes = [2, 1, 64], strides = [1, 1, 1]} : vector<2x8x64xf32> to vector<2x1x64xf32>
    %204 = vector.shape_cast %203 : vector<2x1x64xf32> to vector<2x64xf32>
    %205 = vector.shape_cast %204 : vector<2x64xf32> to vector<2x1x64xf32>
    %206 = vector.broadcast %202 : vector<2x16x1xf32> to vector<2x16x64xf32>
    %207 = vector.broadcast %205 : vector<2x1x64xf32> to vector<2x16x64xf32>
    %208 = arith.mulf %206, %207 : vector<2x16x64xf32>
    %209 = arith.mulf %199, %178 : vector<2x16x64xf32>
    %210 = arith.addf %209, %208 : vector<2x16x64xf32>
    %211 = vector.extract_strided_slice %93 {offsets = [0, 3, 0], sizes = [2, 1, 16], strides = [1, 1, 1]} : vector<2x8x16xf32> to vector<2x1x16xf32>
    %212 = vector.shape_cast %211 : vector<2x1x16xf32> to vector<2x16xf32>
    %213 = vector.shape_cast %212 : vector<2x16xf32> to vector<2x16x1xf32>
    %214 = vector.broadcast %213 : vector<2x16x1xf32> to vector<2x16x64xf32>
    %215 = arith.mulf %210, %214 : vector<2x16x64xf32>
    %cst_38 = arith.constant dense<0.000000e+00> : vector<2x64xf32>
    %216 = vector.multi_reduction <add>, %215, %cst_38 [1] : vector<2x16x64xf32> to vector<2x64xf32>
    %217 = vector.shape_cast %216 : vector<2x64xf32> to vector<2x1x64xf32>
    %218 = vector.shape_cast %217 : vector<2x1x64xf32> to vector<2x1x64xf32>
    %219 = vector.broadcast %218 : vector<2x1x64xf32> to vector<2x8x64xf32>
    %220 = vector.shape_cast %219 : vector<2x8x64xf32> to vector<16x64xf32>
    %c3_i32_39 = arith.constant 3 : i32
    %221 = vector.broadcast %c3_i32_39 : i32 to vector<16x64xi32>
    %222 = arith.cmpi eq, %24, %221 : vector<16x64xi32>
    %223 = arith.select %222, %220, %191 : vector<16x64xi1>, vector<16x64xf32>
    %224 = vector.extract_strided_slice %89 {offsets = [0, 4, 0], sizes = [2, 1, 64], strides = [1, 1, 1]} : vector<2x8x64xf32> to vector<2x1x64xf32>
    %225 = vector.shape_cast %224 : vector<2x1x64xf32> to vector<2x64xf32>
    %226 = vector.shape_cast %225 : vector<2x64xf32> to vector<2x1x64xf32>
    %227 = vector.shape_cast %88 : vector<16x64xf32> to vector<1x16x64xf32>
    %228 = vector.broadcast %226 : vector<2x1x64xf32> to vector<2x16x64xf32>
    %229 = vector.broadcast %227 : vector<1x16x64xf32> to vector<2x16x64xf32>
    %230 = arith.mulf %228, %229 : vector<2x16x64xf32>
    %231 = math.exp %230 : vector<2x16x64xf32>
    %232 = vector.extract_strided_slice %92 {offsets = [0, 4, 0], sizes = [2, 1, 16], strides = [1, 1, 1]} : vector<2x8x16xf32> to vector<2x1x16xf32>
    %233 = vector.shape_cast %232 : vector<2x1x16xf32> to vector<2x16xf32>
    %234 = vector.shape_cast %233 : vector<2x16xf32> to vector<2x16x1xf32>
    %235 = vector.extract_strided_slice %91 {offsets = [0, 4, 0], sizes = [2, 1, 64], strides = [1, 1, 1]} : vector<2x8x64xf32> to vector<2x1x64xf32>
    %236 = vector.shape_cast %235 : vector<2x1x64xf32> to vector<2x64xf32>
    %237 = vector.shape_cast %236 : vector<2x64xf32> to vector<2x1x64xf32>
    %238 = vector.broadcast %234 : vector<2x16x1xf32> to vector<2x16x64xf32>
    %239 = vector.broadcast %237 : vector<2x1x64xf32> to vector<2x16x64xf32>
    %240 = arith.mulf %238, %239 : vector<2x16x64xf32>
    %241 = arith.mulf %231, %210 : vector<2x16x64xf32>
    %242 = arith.addf %241, %240 : vector<2x16x64xf32>
    %243 = vector.extract_strided_slice %93 {offsets = [0, 4, 0], sizes = [2, 1, 16], strides = [1, 1, 1]} : vector<2x8x16xf32> to vector<2x1x16xf32>
    %244 = vector.shape_cast %243 : vector<2x1x16xf32> to vector<2x16xf32>
    %245 = vector.shape_cast %244 : vector<2x16xf32> to vector<2x16x1xf32>
    %246 = vector.broadcast %245 : vector<2x16x1xf32> to vector<2x16x64xf32>
    %247 = arith.mulf %242, %246 : vector<2x16x64xf32>
    %cst_40 = arith.constant dense<0.000000e+00> : vector<2x64xf32>
    %248 = vector.multi_reduction <add>, %247, %cst_40 [1] : vector<2x16x64xf32> to vector<2x64xf32>
    %249 = vector.shape_cast %248 : vector<2x64xf32> to vector<2x1x64xf32>
    %250 = vector.shape_cast %249 : vector<2x1x64xf32> to vector<2x1x64xf32>
    %251 = vector.broadcast %250 : vector<2x1x64xf32> to vector<2x8x64xf32>
    %252 = vector.shape_cast %251 : vector<2x8x64xf32> to vector<16x64xf32>
    %c4_i32 = arith.constant 4 : i32
    %253 = vector.broadcast %c4_i32 : i32 to vector<16x64xi32>
    %254 = arith.cmpi eq, %24, %253 : vector<16x64xi32>
    %255 = arith.select %254, %252, %223 : vector<16x64xi1>, vector<16x64xf32>
    %256 = vector.extract_strided_slice %89 {offsets = [0, 5, 0], sizes = [2, 1, 64], strides = [1, 1, 1]} : vector<2x8x64xf32> to vector<2x1x64xf32>
    %257 = vector.shape_cast %256 : vector<2x1x64xf32> to vector<2x64xf32>
    %258 = vector.shape_cast %257 : vector<2x64xf32> to vector<2x1x64xf32>
    %259 = vector.shape_cast %88 : vector<16x64xf32> to vector<1x16x64xf32>
    %260 = vector.broadcast %258 : vector<2x1x64xf32> to vector<2x16x64xf32>
    %261 = vector.broadcast %259 : vector<1x16x64xf32> to vector<2x16x64xf32>
    %262 = arith.mulf %260, %261 : vector<2x16x64xf32>
    %263 = math.exp %262 : vector<2x16x64xf32>
    %264 = vector.extract_strided_slice %92 {offsets = [0, 5, 0], sizes = [2, 1, 16], strides = [1, 1, 1]} : vector<2x8x16xf32> to vector<2x1x16xf32>
    %265 = vector.shape_cast %264 : vector<2x1x16xf32> to vector<2x16xf32>
    %266 = vector.shape_cast %265 : vector<2x16xf32> to vector<2x16x1xf32>
    %267 = vector.extract_strided_slice %91 {offsets = [0, 5, 0], sizes = [2, 1, 64], strides = [1, 1, 1]} : vector<2x8x64xf32> to vector<2x1x64xf32>
    %268 = vector.shape_cast %267 : vector<2x1x64xf32> to vector<2x64xf32>
    %269 = vector.shape_cast %268 : vector<2x64xf32> to vector<2x1x64xf32>
    %270 = vector.broadcast %266 : vector<2x16x1xf32> to vector<2x16x64xf32>
    %271 = vector.broadcast %269 : vector<2x1x64xf32> to vector<2x16x64xf32>
    %272 = arith.mulf %270, %271 : vector<2x16x64xf32>
    %273 = arith.mulf %263, %242 : vector<2x16x64xf32>
    %274 = arith.addf %273, %272 : vector<2x16x64xf32>
    %275 = vector.extract_strided_slice %93 {offsets = [0, 5, 0], sizes = [2, 1, 16], strides = [1, 1, 1]} : vector<2x8x16xf32> to vector<2x1x16xf32>
    %276 = vector.shape_cast %275 : vector<2x1x16xf32> to vector<2x16xf32>
    %277 = vector.shape_cast %276 : vector<2x16xf32> to vector<2x16x1xf32>
    %278 = vector.broadcast %277 : vector<2x16x1xf32> to vector<2x16x64xf32>
    %279 = arith.mulf %274, %278 : vector<2x16x64xf32>
    %cst_41 = arith.constant dense<0.000000e+00> : vector<2x64xf32>
    %280 = vector.multi_reduction <add>, %279, %cst_41 [1] : vector<2x16x64xf32> to vector<2x64xf32>
    %281 = vector.shape_cast %280 : vector<2x64xf32> to vector<2x1x64xf32>
    %282 = vector.shape_cast %281 : vector<2x1x64xf32> to vector<2x1x64xf32>
    %283 = vector.broadcast %282 : vector<2x1x64xf32> to vector<2x8x64xf32>
    %284 = vector.shape_cast %283 : vector<2x8x64xf32> to vector<16x64xf32>
    %c5_i32 = arith.constant 5 : i32
    %285 = vector.broadcast %c5_i32 : i32 to vector<16x64xi32>
    %286 = arith.cmpi eq, %24, %285 : vector<16x64xi32>
    %287 = arith.select %286, %284, %255 : vector<16x64xi1>, vector<16x64xf32>
    %288 = vector.extract_strided_slice %89 {offsets = [0, 6, 0], sizes = [2, 1, 64], strides = [1, 1, 1]} : vector<2x8x64xf32> to vector<2x1x64xf32>
    %289 = vector.shape_cast %288 : vector<2x1x64xf32> to vector<2x64xf32>
    %290 = vector.shape_cast %289 : vector<2x64xf32> to vector<2x1x64xf32>
    %291 = vector.shape_cast %88 : vector<16x64xf32> to vector<1x16x64xf32>
    %292 = vector.broadcast %290 : vector<2x1x64xf32> to vector<2x16x64xf32>
    %293 = vector.broadcast %291 : vector<1x16x64xf32> to vector<2x16x64xf32>
    %294 = arith.mulf %292, %293 : vector<2x16x64xf32>
    %295 = math.exp %294 : vector<2x16x64xf32>
    %296 = vector.extract_strided_slice %92 {offsets = [0, 6, 0], sizes = [2, 1, 16], strides = [1, 1, 1]} : vector<2x8x16xf32> to vector<2x1x16xf32>
    %297 = vector.shape_cast %296 : vector<2x1x16xf32> to vector<2x16xf32>
    %298 = vector.shape_cast %297 : vector<2x16xf32> to vector<2x16x1xf32>
    %299 = vector.extract_strided_slice %91 {offsets = [0, 6, 0], sizes = [2, 1, 64], strides = [1, 1, 1]} : vector<2x8x64xf32> to vector<2x1x64xf32>
    %300 = vector.shape_cast %299 : vector<2x1x64xf32> to vector<2x64xf32>
    %301 = vector.shape_cast %300 : vector<2x64xf32> to vector<2x1x64xf32>
    %302 = vector.broadcast %298 : vector<2x16x1xf32> to vector<2x16x64xf32>
    %303 = vector.broadcast %301 : vector<2x1x64xf32> to vector<2x16x64xf32>
    %304 = arith.mulf %302, %303 : vector<2x16x64xf32>
    %305 = arith.mulf %295, %274 : vector<2x16x64xf32>
    %306 = arith.addf %305, %304 : vector<2x16x64xf32>
    %307 = vector.extract_strided_slice %93 {offsets = [0, 6, 0], sizes = [2, 1, 16], strides = [1, 1, 1]} : vector<2x8x16xf32> to vector<2x1x16xf32>
    %308 = vector.shape_cast %307 : vector<2x1x16xf32> to vector<2x16xf32>
    %309 = vector.shape_cast %308 : vector<2x16xf32> to vector<2x16x1xf32>
    %310 = vector.broadcast %309 : vector<2x16x1xf32> to vector<2x16x64xf32>
    %311 = arith.mulf %306, %310 : vector<2x16x64xf32>
    %cst_42 = arith.constant dense<0.000000e+00> : vector<2x64xf32>
    %312 = vector.multi_reduction <add>, %311, %cst_42 [1] : vector<2x16x64xf32> to vector<2x64xf32>
    %313 = vector.shape_cast %312 : vector<2x64xf32> to vector<2x1x64xf32>
    %314 = vector.shape_cast %313 : vector<2x1x64xf32> to vector<2x1x64xf32>
    %315 = vector.broadcast %314 : vector<2x1x64xf32> to vector<2x8x64xf32>
    %316 = vector.shape_cast %315 : vector<2x8x64xf32> to vector<16x64xf32>
    %c6_i32 = arith.constant 6 : i32
    %317 = vector.broadcast %c6_i32 : i32 to vector<16x64xi32>
    %318 = arith.cmpi eq, %24, %317 : vector<16x64xi32>
    %319 = arith.select %318, %316, %287 : vector<16x64xi1>, vector<16x64xf32>
    %320 = vector.extract_strided_slice %89 {offsets = [0, 7, 0], sizes = [2, 1, 64], strides = [1, 1, 1]} : vector<2x8x64xf32> to vector<2x1x64xf32>
    %321 = vector.shape_cast %320 : vector<2x1x64xf32> to vector<2x64xf32>
    %322 = vector.shape_cast %321 : vector<2x64xf32> to vector<2x1x64xf32>
    %323 = vector.shape_cast %88 : vector<16x64xf32> to vector<1x16x64xf32>
    %324 = vector.broadcast %322 : vector<2x1x64xf32> to vector<2x16x64xf32>
    %325 = vector.broadcast %323 : vector<1x16x64xf32> to vector<2x16x64xf32>
    %326 = arith.mulf %324, %325 : vector<2x16x64xf32>
    %327 = math.exp %326 : vector<2x16x64xf32>
    %328 = vector.extract_strided_slice %92 {offsets = [0, 7, 0], sizes = [2, 1, 16], strides = [1, 1, 1]} : vector<2x8x16xf32> to vector<2x1x16xf32>
    %329 = vector.shape_cast %328 : vector<2x1x16xf32> to vector<2x16xf32>
    %330 = vector.shape_cast %329 : vector<2x16xf32> to vector<2x16x1xf32>
    %331 = vector.extract_strided_slice %91 {offsets = [0, 7, 0], sizes = [2, 1, 64], strides = [1, 1, 1]} : vector<2x8x64xf32> to vector<2x1x64xf32>
    %332 = vector.shape_cast %331 : vector<2x1x64xf32> to vector<2x64xf32>
    %333 = vector.shape_cast %332 : vector<2x64xf32> to vector<2x1x64xf32>
    %334 = vector.broadcast %330 : vector<2x16x1xf32> to vector<2x16x64xf32>
    %335 = vector.broadcast %333 : vector<2x1x64xf32> to vector<2x16x64xf32>
    %336 = arith.mulf %334, %335 : vector<2x16x64xf32>
    %337 = arith.mulf %327, %306 : vector<2x16x64xf32>
    %338 = arith.addf %337, %336 : vector<2x16x64xf32>
    %339 = vector.extract_strided_slice %93 {offsets = [0, 7, 0], sizes = [2, 1, 16], strides = [1, 1, 1]} : vector<2x8x16xf32> to vector<2x1x16xf32>
    %340 = vector.shape_cast %339 : vector<2x1x16xf32> to vector<2x16xf32>
    %341 = vector.shape_cast %340 : vector<2x16xf32> to vector<2x16x1xf32>
    %342 = vector.broadcast %341 : vector<2x16x1xf32> to vector<2x16x64xf32>
    %343 = arith.mulf %338, %342 : vector<2x16x64xf32>
    %cst_43 = arith.constant dense<0.000000e+00> : vector<2x64xf32>
    %344 = vector.multi_reduction <add>, %343, %cst_43 [1] : vector<2x16x64xf32> to vector<2x64xf32>
    %345 = vector.shape_cast %344 : vector<2x64xf32> to vector<2x1x64xf32>
    %346 = vector.shape_cast %345 : vector<2x1x64xf32> to vector<2x1x64xf32>
    %347 = vector.broadcast %346 : vector<2x1x64xf32> to vector<2x8x64xf32>
    %348 = vector.shape_cast %347 : vector<2x8x64xf32> to vector<16x64xf32>
    %c7_i32 = arith.constant 7 : i32
    %349 = vector.broadcast %c7_i32 : i32 to vector<16x64xi32>
    %350 = arith.cmpi eq, %24, %349 : vector<16x64xi32>
    %351 = arith.select %350, %348, %319 : vector<16x64xi1>, vector<16x64xf32>
    %c0_44 = arith.constant 0 : index
    %c0_45 = arith.constant 0 : index
    %352 = vector.load %arg9[%c0_44, %c0_45] : memref<1x64xf32, #tpu.memory_space<vmem>>, vector<1x64xf32>
    %353 = vector.broadcast %352 : vector<1x64xf32> to vector<16x64xf32>
    %354 = arith.mulf %71, %353 : vector<16x64xf32>
    %355 = arith.addf %351, %354 : vector<16x64xf32>
    %cst_46 = arith.constant 0.000000e+00 : f32
    %356 = vector.broadcast %cst_46 : f32 to vector<16x64xf32>
    %357 = arith.subf %356, %7 : vector<16x64xf32>
    %358 = math.exp %357 : vector<16x64xf32>
    %cst_47 = arith.constant 1.000000e+00 : f32
    %359 = vector.broadcast %cst_47 : f32 to vector<16x64xf32>
    %360 = arith.addf %359, %358 : vector<16x64xf32>
    %361 = tpu.reciprocal %360 {approx = true} : vector<16x64xf32> -> vector<16x64xf32>
    %362 = arith.mulf %7, %361 : vector<16x64xf32>
    %363 = arith.mulf %355, %362 : vector<16x64xf32>
    %364 = arith.truncf %363 : vector<16x64xf32> to vector<16x64xbf16>
    %c0_48 = arith.constant 0 : index
    %c0_49 = arith.constant 0 : index
    %365 = vector.load %arg10[%c0_48, %c0_49] : memref<64x32xbf16, #tpu.memory_space<vmem>>, vector<64x32xbf16>
    %cst_50 = arith.constant dense<0.000000e+00> : vector<16x32xf32>
    %366 = tpu.matmul %364, %365, %cst_50 {dimension_numbers = #tpu.dot_dimension_numbers<[1], [0], [0], [1], [0, 0, 1, 1], [], []>} : vector<16x64xbf16>, vector<64x32xbf16>, vector<16x32xf32> -> vector<16x32xf32>
    %cst_51 = arith.constant dense<0.000000e+00> : vector<16xf32>
    %367 = vector.multi_reduction <add>, %366, %cst_51 [1] : vector<16x32xf32> to vector<16xf32>
    %368 = vector.shape_cast %367 : vector<16xf32> to vector<16x1xf32>
    %cst_52 = arith.constant 3.200000e+01 : f32
    %369 = vector.broadcast %cst_52 : f32 to vector<16x1xf32>
    %370 = arith.divf %368, %369 : vector<16x1xf32>
    %371 = vector.broadcast %370 : vector<16x1xf32> to vector<16x32xf32>
    %372 = arith.subf %366, %371 : vector<16x32xf32>
    %373 = arith.mulf %372, %372 : vector<16x32xf32>
    %cst_53 = arith.constant dense<0.000000e+00> : vector<16xf32>
    %374 = vector.multi_reduction <add>, %373, %cst_53 [1] : vector<16x32xf32> to vector<16xf32>
    %375 = vector.shape_cast %374 : vector<16xf32> to vector<16x1xf32>
    %cst_54 = arith.constant 3.200000e+01 : f32
    %376 = vector.broadcast %cst_54 : f32 to vector<16x1xf32>
    %377 = arith.divf %375, %376 : vector<16x1xf32>
    %378 = vector.broadcast %370 : vector<16x1xf32> to vector<16x32xf32>
    %379 = arith.subf %366, %378 : vector<16x32xf32>
    %cst_55 = arith.constant 9.99999974E-6 : f32
    %380 = vector.broadcast %cst_55 : f32 to vector<16x1xf32>
    %381 = arith.addf %377, %380 : vector<16x1xf32>
    %382 = math.rsqrt %381 : vector<16x1xf32>
    %383 = vector.broadcast %382 : vector<16x1xf32> to vector<16x32xf32>
    %384 = arith.mulf %379, %383 : vector<16x32xf32>
    %c0_56 = arith.constant 0 : index
    %c0_57 = arith.constant 0 : index
    %385 = vector.load %arg11[%c0_56, %c0_57] : memref<1x32xf32, #tpu.memory_space<vmem>>, vector<1x32xf32>
    %386 = vector.broadcast %385 : vector<1x32xf32> to vector<16x32xf32>
    %387 = arith.mulf %384, %386 : vector<16x32xf32>
    %c0_58 = arith.constant 0 : index
    %c0_59 = arith.constant 0 : index
    %388 = vector.load %arg12[%c0_58, %c0_59] : memref<1x32xf32, #tpu.memory_space<vmem>>, vector<1x32xf32>
    %389 = vector.broadcast %388 : vector<1x32xf32> to vector<16x32xf32>
    %390 = arith.addf %387, %389 : vector<16x32xf32>
    %c0_60 = arith.constant 0 : index
    %c0_61 = arith.constant 0 : index
    %391 = vector.load %arg13[%c0_60, %c0_61] : memref<16x32xf32, #tpu.memory_space<vmem>>, vector<16x32xf32>
    tpu.vector_store %arg13[%c0_60, %c0_61], %390 {strides = array<i32>} : memref<16x32xf32, #tpu.memory_space<vmem>>, vector<16x32xf32>,
    return
  }
  func.func @transform_0(%arg0: i32) -> (i32, i32) {
    %c0_i32 = arith.constant 0 : i32
    %c0_i32_0 = arith.constant 0 : i32
    return %arg0, %c0_i32 : i32, i32
  }
  func.func @transform_1(%arg0: i32) -> (i32, i32) {
    %c0_i32 = arith.constant 0 : i32
    %c0_i32_0 = arith.constant 0 : i32
    return %arg0, %c0_i32 : i32, i32
  }
  func.func @transform_2(%arg0: i32) -> (i32, i32) {
    %c0_i32 = arith.constant 0 : i32
    %c0_i32_0 = arith.constant 0 : i32
    %c0_i32_1 = arith.constant 0 : i32
    return %c0_i32, %c0_i32_0 : i32, i32
  }
  func.func @transform_3(%arg0: i32) -> (i32, i32) {
    %c0_i32 = arith.constant 0 : i32
    %c0_i32_0 = arith.constant 0 : i32
    %c0_i32_1 = arith.constant 0 : i32
    return %c0_i32, %c0_i32_0 : i32, i32
  }
  func.func @transform_4(%arg0: i32) -> (i32, i32) {
    %c0_i32 = arith.constant 0 : i32
    %c0_i32_0 = arith.constant 0 : i32
    %c0_i32_1 = arith.constant 0 : i32
    return %c0_i32, %c0_i32_0 : i32, i32
  }
  func.func @transform_5(%arg0: i32) -> (i32, i32) {
    %c0_i32 = arith.constant 0 : i32
    %c0_i32_0 = arith.constant 0 : i32
    %c0_i32_1 = arith.constant 0 : i32
    return %c0_i32, %c0_i32_0 : i32, i32
  }
  func.func @transform_6(%arg0: i32) -> (i32, i32) {
    %c0_i32 = arith.constant 0 : i32
    %c0_i32_0 = arith.constant 0 : i32
    %c0_i32_1 = arith.constant 0 : i32
    return %c0_i32, %c0_i32_0 : i32, i32
  }
  func.func @transform_7(%arg0: i32) -> (i32, i32) {
    %c0_i32 = arith.constant 0 : i32
    %c0_i32_0 = arith.constant 0 : i32
    %c0_i32_1 = arith.constant 0 : i32
    return %c0_i32, %c0_i32_0 : i32, i32
  }
  func.func @transform_8(%arg0: i32) -> (i32, i32) {
    %c0_i32 = arith.constant 0 : i32
    %c0_i32_0 = arith.constant 0 : i32
    %c0_i32_1 = arith.constant 0 : i32
    return %c0_i32, %c0_i32_0 : i32, i32
  }
  func.func @transform_9(%arg0: i32) -> (i32, i32) {
    %c0_i32 = arith.constant 0 : i32
    %c0_i32_0 = arith.constant 0 : i32
    %c0_i32_1 = arith.constant 0 : i32
    return %c0_i32, %c0_i32_0 : i32, i32
  }
  func.func @transform_10(%arg0: i32) -> (i32, i32) {
    %c0_i32 = arith.constant 0 : i32
    %c0_i32_0 = arith.constant 0 : i32
    %c0_i32_1 = arith.constant 0 : i32
    return %c0_i32, %c0_i32_0 : i32, i32
  }
  func.func @transform_11(%arg0: i32) -> (i32, i32) {
    %c0_i32 = arith.constant 0 : i32
    %c0_i32_0 = arith.constant 0 : i32
    %c0_i32_1 = arith.constant 0 : i32
    return %c0_i32, %c0_i32_0 : i32, i32
  }
  func.func @transform_12(%arg0: i32) -> (i32, i32) {
    %c0_i32 = arith.constant 0 : i32
    %c0_i32_0 = arith.constant 0 : i32
    return %arg0, %c0_i32 : i32, i32
  }
}

</mosaic_0001>

<llo_original>
// kernel: tpu_custom_call.1
$region0: #{tpu_custom_call.1}
  #allocation0 [shape = 'u32[]', space=smem, size = 0x4, offset = 0x4, fixed_abs, tag = 'smem constant byte address 0x4 - core index']
  #allocation1 [shape = 'u32[144,128]{1,0:T(1,128)}', space=vmem, size = 0x12000, scoped, tag = 'internal scratch']
  %s0 = inlined_call_operand.vmem [shape: f32[16,12], index: 0, kind: input, shape index: {}]
  %s1 = inlined_call_operand.hbm [shape: f32[16,128], index: 1, kind: input, shape index: {}]
  %s2 = inlined_call_operand.vmem [shape: bf16[12,128], index: 2, kind: input, shape index: {}]
  %s3 = inlined_call_operand.vmem [shape: f32[4,64], index: 3, kind: input, shape index: {}]
  %s4 = inlined_call_operand.vmem [shape: f32[1,64], index: 4, kind: input, shape index: {}]
  %s5 = inlined_call_operand.vmem [shape: bf16[64,96], index: 5, kind: input, shape index: {}]
  %s6 = inlined_call_operand.vmem [shape: f32[1,64], index: 6, kind: input, shape index: {}]
  %s7 = inlined_call_operand.hbm [shape: f32[16,64], index: 7, kind: input, shape index: {}]
  %s8 = inlined_call_operand.hbm [shape: f32[1,64], index: 8, kind: input, shape index: {}]
  %s9 = inlined_call_operand.vmem [shape: bf16[64,32], index: 9, kind: input, shape index: {}]
  %s10 = inlined_call_operand.vmem [shape: f32[1,32], index: 10, kind: input, shape index: {}]
  %s11 = inlined_call_operand.vmem [shape: f32[1,32], index: 11, kind: input, shape index: {}]
  %s12 = inlined_call_operand.hbm [shape: f32[16,32], index: 12, kind: output, shape index: {}]
  %s13 = sld [smem:[#allocation0]]
  $region70: #{tpu_custom_call.1} parent=0
    _
  %s15 = ssub.s32 1, %s13
  %s16 = scalar_select 0, %s15, %s13
  $region1: #{tpu_custom_call.1} parent=0
    #allocation2 [shape = 'u8[8192]{0}', space=vmem, size = 0x2000, scoped, tag = 'input window, operand 1, single buffered']
    #allocation3 [shape = 's32[1]{0}', space=sflag, size = 0x4, scoped, tag = 'scoped memory for tpu_custom_call.1']
    #allocation4 [shape = 's32[1]{0}', space=sflag, size = 0x4, scoped, tag = 'scoped memory for tpu_custom_call.1']
    #allocation5 [shape = 'u8[8192]{0}', space=vmem, size = 0x2000, scoped, tag = 'input window, operand 7, single buffered']
    #allocation6 [shape = 's32[1]{0}', space=sflag, size = 0x4, scoped, tag = 'scoped memory for tpu_custom_call.1']
    #allocation7 [shape = 'u8[512]{0}', space=vmem, size = 0x400, scoped, tag = 'input window, operand 8, single buffered']
    #allocation8 [shape = 'u8[8192]{0}', space=vmem, size = 0x2000, scoped, tag = 'output window, operand 0, single buffered']
    %17 = vsyncpa [#allocation3], 0
    %18 = vsyncpa [#allocation6], 0
    %19 = vsyncpa [#allocation4], 0
    // Predicated region
    $region2: #{tpu_custom_call.1} parent=1 // pred_check
      _
    $region3: #{tpu_custom_call.1} parent=1 // pred_check_branch
      %21 = sbr.rel (0) target = $region5
    $region4: #{tpu_custom_call.1} parent=1 // pred_region
      _
    $region5: #{tpu_custom_call.1} parent=1 // pred_fallthru
      _
    // Predicated region
    $region6: #{tpu_custom_call.1} parent=1 // pred_check
      _
    $region7: #{tpu_custom_call.1} parent=1 // pred_check_branch
      %23 = sbr.rel (0) target = $region9
    $region8: #{tpu_custom_call.1} parent=1 // pred_region
      %s25 = ssub.s32 256, 256
      %26 = vsyncadd [#allocation3], %s25
      %s27 = sshll.u32 [#allocation2], 4
      %s28 = int_to_ptr.vmem [resolvable:$true] %s27
      %33 = dma.hbm_to_vmem [thread:$0]  %s1, 256, %s28, [#allocation3], 128, 128, 8
    $region9: #{tpu_custom_call.1} parent=1 // pred_fallthru
      _
    // Predicated region
    $region10: #{tpu_custom_call.1} parent=1 // pred_check
      _
    $region11: #{tpu_custom_call.1} parent=1 // pred_check_branch
      %35 = sbr.rel (0) target = $region13
    $region12: #{tpu_custom_call.1} parent=1 // pred_region
      _
    $region13: #{tpu_custom_call.1} parent=1 // pred_fallthru
      _
    // Predicated region
    $region14: #{tpu_custom_call.1} parent=1 // pred_check
      _
    $region15: #{tpu_custom_call.1} parent=1 // pred_check_branch
      %37 = sbr.rel (0) target = $region17
    $region16: #{tpu_custom_call.1} parent=1 // pred_region
      _
    $region17: #{tpu_custom_call.1} parent=1 // pred_fallthru
      _
    // Predicated region
    $region18: #{tpu_custom_call.1} parent=1 // pred_check
      _
    $region19: #{tpu_custom_call.1} parent=1 // pred_check_branch
      %39 = sbr.rel (0) target = $region21
    $region20: #{tpu_custom_call.1} parent=1 // pred_region
      _
    $region21: #{tpu_custom_call.1} parent=1 // pred_fallthru
      _
    // Predicated region
    $region22: #{tpu_custom_call.1} parent=1 // pred_check
      _
    $region23: #{tpu_custom_call.1} parent=1 // pred_check_branch
      %41 = sbr.rel (0) target = $region25
    $region24: #{tpu_custom_call.1} parent=1 // pred_region
      _
    $region25: #{tpu_custom_call.1} parent=1 // pred_fallthru
      _
    // Predicated region
    $region26: #{tpu_custom_call.1} parent=1 // pred_check
      _
    $region27: #{tpu_custom_call.1} parent=1 // pred_check_branch
      %43 = sbr.rel (0) target = $region29
    $region28: #{tpu_custom_call.1} parent=1 // pred_region
      _
    $region29: #{tpu_custom_call.1} parent=1 // pred_fallthru
      _
    // Predicated region
    $region30: #{tpu_custom_call.1} parent=1 // pred_check
      _
    $region31: #{tpu_custom_call.1} parent=1 // pred_check_branch
      %45 = sbr.rel (0) target = $region33
    $region32: #{tpu_custom_call.1} parent=1 // pred_region
      %s47 = ssub.s32 256, 256
      %48 = vsyncadd [#allocation6], %s47
      %s49 = sshll.u32 [#allocation5], 4
      %s50 = int_to_ptr.vmem [resolvable:$true] %s49
      %55 = dma.hbm_to_vmem [thread:$0]  %s7, 256, %s50, [#allocation6], 128, 128, 8
    $region33: #{tpu_custom_call.1} parent=1 // pred_fallthru
      _
    // Predicated region
    $region34: #{tpu_custom_call.1} parent=1 // pred_check
      _
    $region35: #{tpu_custom_call.1} parent=1 // pred_check_branch
      %57 = sbr.rel (0) target = $region37
    $region36: #{tpu_custom_call.1} parent=1 // pred_region
      %s59 = ssub.s32 16, 16
      %60 = vsyncadd [#allocation6], %s59
      %s62 = sshll.u32 [#allocation7], 4
      %s63 = int_to_ptr.vmem [resolvable:$true] %s62
      %65 = dma.hbm_to_vmem [thread:$0]  %s8, 16, %s63, [#allocation6]
    $region37: #{tpu_custom_call.1} parent=1 // pred_fallthru
      _
    // Predicated region
    $region38: #{tpu_custom_call.1} parent=1 // pred_check
      _
    $region39: #{tpu_custom_call.1} parent=1 // pred_check_branch
      %67 = sbr.rel (0) target = $region41
    $region40: #{tpu_custom_call.1} parent=1 // pred_region
      _
    $region41: #{tpu_custom_call.1} parent=1 // pred_fallthru
      _
    // Predicated region
    $region42: #{tpu_custom_call.1} parent=1 // pred_check
      _
    $region43: #{tpu_custom_call.1} parent=1 // pred_check_branch
      %69 = sbr.rel (0) target = $region45
    $region44: #{tpu_custom_call.1} parent=1 // pred_region
      _
    $region45: #{tpu_custom_call.1} parent=1 // pred_fallthru
      _
    // Predicated region
    $region46: #{tpu_custom_call.1} parent=1 // pred_check
      _
    $region47: #{tpu_custom_call.1} parent=1 // pred_check_branch
      %71 = sbr.rel (0) target = $region49
    $region48: #{tpu_custom_call.1} parent=1 // pred_region
      _
    $region49: #{tpu_custom_call.1} parent=1 // pred_fallthru
      _
    // Predicated region
    $region50: #{tpu_custom_call.1} parent=1 // pred_check
      _
    $region51: #{tpu_custom_call.1} parent=1 // pred_check_branch
      %73 = sbr.rel (0) target = $region53
    $region52: #{tpu_custom_call.1} parent=1 // pred_region
      %74 = dma.done [#allocation3], 256
    $region53: #{tpu_custom_call.1} parent=1 // pred_fallthru
      _
    // Predicated region
    $region54: #{tpu_custom_call.1} parent=1 // pred_check
      _
    $region55: #{tpu_custom_call.1} parent=1 // pred_check_branch
      %76 = sbr.rel (0) target = $region57
    $region56: #{tpu_custom_call.1} parent=1 // pred_region
      %77 = dma.done [#allocation6], 256
    $region57: #{tpu_custom_call.1} parent=1 // pred_fallthru
      _
    // Predicated region
    $region58: #{tpu_custom_call.1} parent=1 // pred_check
      _
    $region59: #{tpu_custom_call.1} parent=1 // pred_check_branch
      %79 = sbr.rel (0) target = $region61
    $region60: #{tpu_custom_call.1} parent=1 // pred_region
      %80 = dma.done [#allocation6], 16
    $region61: #{tpu_custom_call.1} parent=1 // pred_fallthru
      _
    %v82 = vld [vmem:[%s0] sm:$0xff]
    %v83 = vld [vmem:[%s0 + $0x8] sm:$0xff]
    %v84 = vpack.c.bf16 %v83, %v82
    %v85 = vld [vmem:[%s2] sm:$0xf]
    %v86 = vld [vmem:[%s2 + $0x4] sm:$0x3]
    %v87 = vld [vmem:[#allocation2] sm:$0xff]
    %v88 = vld [vmem:[#allocation2 + $0x8] sm:$0xff]
    %v91 = vunpack.c.l.b16 %v85
    %v92 = vunpack.c.l.b16 %v86
    %v93 = vpack.c.b16 %v92, %v91
    %vm94 = vcmask 97280
    %v96 = vsel %vm94, %v84, 0
    %vm98 = vcmask 1045504
    %v100 = vsel %vm98, %v93, 0
    %102 = vmatprep.subr.bf16.mxu0 0
    %103 = vmatpush1.bf16.msra.mxu0 %v100
    %104 = vmatprep.subr.bf16.mxu0 0
    %105 = vmatpush1.bf16.msra.mxu0 0
    %106 = vmatprep.subr.bf16.mxu0 0
    %107 = vmatpush1.bf16.msra.mxu0 0
    %108 = vmatprep.subr.bf16.mxu0 0
    %109 = vmatpush1.bf16.msra.mxu0 0
    %110 = vmatprep.subr.bf16.mxu0 0
    %111 = vmatpush1.bf16.msra.mxu0 0
    %112 = vmatprep.subr.bf16.mxu0 0
    %113 = vmatpush1.bf16.msra.mxu0 0
    %114 = vmatprep.subr.bf16.mxu0 0
    %115 = vmatpush1.bf16.msra.mxu0 0
    %116 = vmatprep.subr.bf16.mxu0 0
    %117 = vmatpush1.bf16.msra.mxu0 0
    %118 = vmatprep.subr.bf16.mxu0 0
    %119 = vmatpush1.bf16.msra.mxu0 0
    %120 = vmatprep.subr.bf16.mxu0 0
    %121 = vmatpush1.bf16.msra.mxu0 0
    %122 = vmatprep.subr.bf16.mxu0 0
    %123 = vmatpush1.bf16.msra.mxu0 0
    %124 = vmatprep.subr.bf16.mxu0 0
    %125 = vmatpush1.bf16.msra.mxu0 0
    %126 = vmatprep.subr.bf16.mxu0 0
    %127 = vmatpush1.bf16.msra.mxu0 0
    %128 = vmatprep.subr.bf16.mxu0 0
    %129 = vmatpush1.bf16.msra.mxu0 0
    %130 = vmatprep.subr.bf16.mxu0 0
    %131 = vmatpush1.bf16.msra.mxu0 0
    %132 = vmatprep.subr.bf16.mxu0 0
    %133 = vmatpush1.bf16.msra.mxu0 0
    %134 = vmatprep.mubr.bf16.mxu0 0
    %135 = vmatmul.mubr.bf16.gmra.mrb[0].mxu0 %v96
    %v136 = vpop.f32.mrb[0].mxu0
    %v137 = vadd.f32 %v87, %v136
    %v138 = vpop.f32.mrb[0].mxu0
    %v139 = vpop.f32.mrb[0].mxu0
    %v140 = vadd.f32 %v88, %v139
    %v141 = vpop.f32.mrb[0].mxu0
    %142 = vdwg.mxu0
    %v143 = vlaneseq
    %v144 = vshrl.u32 %v143, 7
    %v145 = vadd.s32 %v144, 8
    %vm146 = vcmp.lt.s32.totalorder %v144, 0
    %v147 = vsub.s32 0, %v144
    %v148 = vsel %vm146, %v147, %v144
    %v149 = vshrl.u32 %v148, 3
    %v150 = vand.u32 %v148, 7
    %v151 = vsub.s32 0, %v150
    %v152 = vsel %vm146, %v151, %v150
    %vm153 = vcmp.lt.s32.totalorder %v145, 0
    %v154 = vsub.s32 0, %v145
    %v155 = vsel %vm153, %v154, %v145
    %v156 = vshrl.u32 %v155, 3
    %v157 = vand.u32 %v155, 7
    %v158 = vsub.s32 0, %v157
    %v159 = vsel %vm153, %v158, %v157
    %vm160 = vcmp.ne.s32.totalorder %v152, 0
    %vm161 = vcmp.ne.s32.totalorder %v159, 0
    %vm162 = vcmp.lt.s32.totalorder %v152, 0
    %vm163 = vcmp.lt.s32.totalorder %v159, 0
    %vm164 = vmand %vm162, %vm160
    %vm165 = vmand %vm163, %vm161
    %v166 = vadd.s32 %v152, 8
    %v167 = vadd.s32 %v159, 8
    %v168 = vsel %vm164, %v166, %v152
    %v169 = vsel %vm165, %v167, %v159
    %v170 = vld [vmem:[%s3] sm:$0xf]
    %v171 = vlaneseq
    %v172 = vshrl.u32 %v171, 7
    %v173 = vsub.s32 3, %v172
    %v174 = vrot.slane %v170, %v173
    %v175 = vmul.f32 %v137, %v174
    %v176 = vmul.f32 %v140, %v174
    %vm179 = vcmask 1042432
    %v180 = vrot.slane %v137, 5
    %v181 = vrot.slane %v140, 5
    %v182 = vsel %vm179, %v180, %v181
    %v185 = vsel %vm179, 0.0, %v180
    %vm186 = vcmp.ge.s32.totalorder %v168, 3
    %vm187 = vcmp.ge.s32.totalorder %v169, 3
    %v188 = vsel %vm186, %v185, 0.0
    %v189 = vsel %vm187, %v182, 0.0
    %v190 = vlaneseq
    %v191 = vshrl.u32 %v190, 7
    %v192 = vsub.s32 0, %v191
    %v193 = vrot.slane %v170, %v192
    %v194 = vmul.f32 %v188, %v193
    %v195 = vmul.f32 %v189, %v193
    %v196 = vadd.f32 %v175, %v194
    %v197 = vadd.f32 %v176, %v195
    %vm198 = vcmask 1041408
    %v199 = vrot.slane %v137, 6
    %v200 = vrot.slane %v140, 6
    %v201 = vsel %vm198, %v199, %v200
    %v204 = vsel %vm198, 0.0, %v199
    %vm205 = vcmp.ge.s32.totalorder %v168, 2
    %vm206 = vcmp.ge.s32.totalorder %v169, 2
    %v207 = vsel %vm205, %v204, 0.0
    %v208 = vsel %vm206, %v201, 0.0
    %v209 = vlaneseq
    %v210 = vshrl.u32 %v209, 7
    %v211 = vsub.s32 1, %v210
    %v212 = vrot.slane %v170, %v211
    %v213 = vmul.f32 %v207, %v212
    %v214 = vmul.f32 %v208, %v212
    %v215 = vadd.f32 %v196, %v213
    %v216 = vadd.f32 %v197, %v214
    %vm217 = vcmask 1040384
    %v218 = vrot.slane %v137, 7
    %v219 = vrot.slane %v140, 7
    %v220 = vsel %vm217, %v218, %v219
    %v223 = vsel %vm217, 0.0, %v218
    %vm224 = vcmp.ge.s32.totalorder %v168, 1
    %vm225 = vcmp.ge.s32.totalorder %v169, 1
    %v226 = vsel %vm224, %v223, 0.0
    %v227 = vsel %vm225, %v220, 0.0
    %v228 = vlaneseq
    %v229 = vshrl.u32 %v228, 7
    %v230 = vsub.s32 2, %v229
    %v231 = vrot.slane %v170, %v230
    %v232 = vmul.f32 %v226, %v231
    %v233 = vmul.f32 %v227, %v231
    %v234 = vadd.f32 %v215, %v232
    %v235 = vadd.f32 %v216, %v233
    %v236 = vld [vmem:[%s4] sm:$0x1]
    %v238 = vlaneseq
    %v239 = vshrl.u32 %v238, 7
    %v240 = vsub.s32 0, %v239
    %v241 = vrot.slane %v236, %v240
    %v243 = vadd.f32 %v234, %v241
    %v244 = vadd.f32 %v235, %v241
    %v245 = vsub.f32 0.0, %v243
    %v246 = vsub.f32 0.0, %v244
    %v247 = vmul.f32 %v245, 1.442695
    %v248 = vpow.pop %v247
    %v249 = vmul.f32 %v246, 1.442695
    %v250 = vpow.pop %v249
    %v251 = vadd.f32 %v248, 1.0
    %v252 = vadd.f32 %v250, 1.0
    %v253 = vrcp.pop %v251
    %v254 = vrcp.pop %v252
    %v255 = vmul.f32 %v243, %v253
    %v256 = vmul.f32 %v244, %v254
    %v257 = vpack.c.bf16 %v256, %v255
    %v258 = vld [vmem:[%s5] sm:$0xf]
    %v259 = vld [vmem:[%s5 + $0x4] sm:$0xf]
    %v260 = vld [vmem:[%s5 + $0x8] sm:$0xf]
    %v261 = vld [vmem:[%s5 + $0xc] sm:$0xf]
    %v262 = vld [vmem:[%s5 + $0x10] sm:$0xf]
    %v263 = vld [vmem:[%s5 + $0x14] sm:$0xf]
    %v264 = vld [vmem:[%s5 + $0x18] sm:$0xf]
    %v265 = vld [vmem:[%s5 + $0x1c] sm:$0xf]
    %v274 = vunpack.c.l.b16 %v258
    %v275 = vunpack.c.l.b16 %v259
    %v276 = vunpack.c.l.b16 %v260
    %v277 = vunpack.c.l.b16 %v261
    %v278 = vunpack.c.l.b16 %v262
    %v279 = vunpack.c.l.b16 %v263
    %v280 = vunpack.c.l.b16 %v264
    %v281 = vunpack.c.l.b16 %v265
    %v282 = vpack.c.b16 %v275, %v274
    %v283 = vpack.c.b16 %v277, %v276
    %v284 = vpack.c.b16 %v279, %v278
    %v285 = vpack.c.b16 %v281, %v280
    %vm290 = vcmask 523264
    %v292 = vsel %vm290, %v257, 0
    %294 = vmatprep.subr.bf16.mxu0 0
    %295 = vmatpush1.bf16.msra.mxu0 %v282
    %296 = vmatprep.subr.bf16.mxu0 0
    %297 = vmatpush1.bf16.msra.mxu0 %v283
    %298 = vmatprep.subr.bf16.mxu0 0
    %299 = vmatpush1.bf16.msra.mxu0 %v284
    %300 = vmatprep.subr.bf16.mxu0 0
    %301 = vmatpush1.bf16.msra.mxu0 %v285
    %302 = vmatprep.subr.bf16.mxu0 0
    %303 = vmatpush1.bf16.msra.mxu0 0
    %304 = vmatprep.subr.bf16.mxu0 0
    %305 = vmatpush1.bf16.msra.mxu0 0
    %306 = vmatprep.subr.bf16.mxu0 0
    %307 = vmatpush1.bf16.msra.mxu0 0
    %308 = vmatprep.subr.bf16.mxu0 0
    %309 = vmatpush1.bf16.msra.mxu0 0
    %310 = vmatprep.subr.bf16.mxu0 0
    %311 = vmatpush1.bf16.msra.mxu0 0
    %312 = vmatprep.subr.bf16.mxu0 0
    %313 = vmatpush1.bf16.msra.mxu0 0
    %314 = vmatprep.subr.bf16.mxu0 0
    %315 = vmatpush1.bf16.msra.mxu0 0
    %316 = vmatprep.subr.bf16.mxu0 0
    %317 = vmatpush1.bf16.msra.mxu0 0
    %318 = vmatprep.subr.bf16.mxu0 0
    %319 = vmatpush1.bf16.msra.mxu0 0
    %320 = vmatprep.subr.bf16.mxu0 0
    %321 = vmatpush1.bf16.msra.mxu0 0
    %322 = vmatprep.subr.bf16.mxu0 0
    %323 = vmatpush1.bf16.msra.mxu0 0
    %324 = vmatprep.subr.bf16.mxu0 0
    %325 = vmatpush1.bf16.msra.mxu0 0
    %326 = vmatprep.mubr.bf16.mxu0 0
    %327 = vmatmul.mubr.bf16.gmra.mrb[0].mxu0 %v292
    %v328 = vpop.f32.mrb[0].mxu0
    %v329 = vadd.f32 0.0, %v328
    %v330 = vpop.f32.mrb[0].mxu0
    %v331 = vpop.f32.mrb[0].mxu0
    %v332 = vadd.f32 0.0, %v331
    %v333 = vpop.f32.mrb[0].mxu0
    %334 = vdwg.mxu0
    %v335 = vld [vmem:[%s6] sm:$0x1]
    %v337 = vlaneseq
    %v338 = vshrl.u32 %v337, 7
    %v339 = vsub.s32 0, %v338
    %v340 = vrot.slane %v335, %v339
    %v342 = vadd.f32 %v329, %v340
    %v343 = vadd.f32 %v332, %v340
    %vm344 = vcmp.gt.f32.partialorder %v342, 20.0
    %vm345 = vcmp.gt.f32.partialorder %v343, 20.0
    %v346 = vmin.f32 %v342, 20.0
    %v347 = vmin.f32 %v343, 20.0
    %v348 = vmul.f32 %v346, 1.442695
    %v349 = vpow.pop %v348
    %v350 = vmul.f32 %v347, 1.442695
    %v351 = vpow.pop %v350
    %v352 = vadd.f32 %v349, 1.0
    %v353 = vlog2.pop %v352
    %v354 = vmul.f32 %v353, 0.6931472
    %v355 = vmul.f32 -0.5, %v349
    %v356 = vadd.f32 %v355, 1.0
    %v357 = vmul.f32 %v356, %v349
    %v358 = vand.u32 2147483647, %v349
    %vm359 = vcmp.lt.f32.partialorder %v358, 0.0004427343
    %v360 = vsel %vm359, %v357, %v354
    %v361 = vadd.f32 %v351, 1.0
    %v362 = vlog2.pop %v361
    %v363 = vmul.f32 %v362, 0.6931472
    %v364 = vmul.f32 -0.5, %v351
    %v365 = vadd.f32 %v364, 1.0
    %v366 = vmul.f32 %v365, %v351
    %v367 = vand.u32 2147483647, %v351
    %vm368 = vcmp.lt.f32.partialorder %v367, 0.0004427343
    %v369 = vsel %vm368, %v366, %v363
    %v370 = vsel %vm344, %v342, %v360
    %v371 = vsel %vm345, %v343, %v369
    %v372 = vld [vmem:[#allocation5] sm:$0xff]
    %v373 = vld [vmem:[#allocation5 + $0x8] sm:$0xff]
    %v374 = vmul.f32 %v370, %v255
    %v375 = vmul.f32 %v371, %v256
    %v376 = vlaneseq
    %v377 = vshrl.u32 %v376, 7
    %v378 = vsub.s32 0, %v377
    %v379 = vrot.slane %v370, %v378
    %v380 = vlaneseq
    %v381 = vshrl.u32 %v380, 7
    %v382 = vsub.s32 0, %v381
    %v383 = vrot.slane %v371, %v382
    %v384 = vmul.f32 %v379, %v372
    %v385 = vmul.f32 %v379, %v373
    %v386 = vmul.f32 %v383, %v372
    %v387 = vmul.f32 %v383, %v373
    %v388 = vmul.f32 %v384, 1.442695
    %v389 = vpow.pop %v388
    %v390 = vmul.f32 %v385, 1.442695
    %v391 = vpow.pop %v390
    %v392 = vmul.f32 %v386, 1.442695
    %v393 = vpow.pop %v392
    %v394 = vmul.f32 %v387, 1.442695
    %v395 = vpow.pop %v394
    %v396 = vlaneseq
    %v397 = vshrl.u32 %v396, 7
    %v398 = vsub.s32 0, %v397
    %v399 = vrot.slane %v329, %v398
    %s401 = sor.u32 256, 64
    %402 = vbcast.lane.b32.xlu0 %v399, %s401
    %v403 = vpop.permute.xlu0 %402
    %s405 = sor.u32 256, 72
    %406 = vbcast.lane.b32.xlu0 %v399, %s405
    %v407 = vpop.permute.xlu0 %406
    %v408 = vlaneseq
    %v409 = vshrl.u32 %v408, 7
    %v410 = vsub.s32 0, %v409
    %v411 = vrot.slane %v332, %v410
    %s413 = sor.u32 256, 64
    %414 = vbcast.lane.b32.xlu0 %v411, %s413
    %v415 = vpop.permute.xlu0 %414
    %s417 = sor.u32 256, 72
    %418 = vbcast.lane.b32.xlu0 %v411, %s417
    %v419 = vpop.permute.xlu0 %418
    %v420 = vlaneseq
    %v421 = vshrl.u32 %v420, 7
    %v422 = vsub.s32 0, %v421
    %v423 = vrot.slane %v374, %v422
    %v424 = vlaneseq
    %v425 = vshrl.u32 %v424, 7
    %v426 = vsub.s32 0, %v425
    %v427 = vrot.slane %v375, %v426
    %v428 = vmul.f32 %v403, %v423
    %v429 = vmul.f32 %v407, %v423
    %v430 = vmul.f32 %v415, %v427
    %v431 = vmul.f32 %v419, %v427
    %v432 = vmul.f32 %v389, 0.0
    %v433 = vmul.f32 %v391, 0.0
    %v434 = vmul.f32 %v393, 0.0
    %v435 = vmul.f32 %v395, 0.0
    %v436 = vadd.f32 %v432, %v428
    %v437 = vadd.f32 %v433, %v429
    %v438 = vadd.f32 %v434, %v430
    %v439 = vadd.f32 %v435, %v431
    %s441 = sor.u32 256, 80
    %442 = vbcast.lane.b32.xlu0 %v399, %s441
    %v443 = vpop.permute.xlu0 %442
    %s445 = sor.u32 256, 88
    %446 = vbcast.lane.b32.xlu0 %v399, %s445
    %v447 = vpop.permute.xlu0 %446
    %s449 = sor.u32 256, 80
    %450 = vbcast.lane.b32.xlu0 %v411, %s449
    %v451 = vpop.permute.xlu0 %450
    %s453 = sor.u32 256, 88
    %454 = vbcast.lane.b32.xlu0 %v411, %s453
    %v455 = vpop.permute.xlu0 %454
    %v456 = vmul.f32 %v436, %v443
    %v457 = vmul.f32 %v437, %v447
    %v458 = vmul.f32 %v438, %v451
    %v459 = vmul.f32 %v439, %v455
    %v460 = vsel %vm290, %v456, 0.0
    %v461 = vsel %vm290, %v457, 0.0
    %v462 = vadd.f32 %v460, %v461
    %v463 = vrot.slane %v462, 4
    %v464 = vadd.f32 %v462, %v463
    %v465 = vrot.slane %v464, 2
    %v466 = vadd.f32 %v464, %v465
    %v467 = vrot.slane %v466, 1
    %v468 = vadd.f32 %v466, %v467
    %v469 = vsel %vm290, %v458, 0.0
    %v470 = vsel %vm290, %v459, 0.0
    %v471 = vadd.f32 %v469, %v470
    %v472 = vrot.slane %v471, 4
    %v473 = vadd.f32 %v471, %v472
    %v474 = vrot.slane %v473, 2
    %v475 = vadd.f32 %v473, %v474
    %v476 = vrot.slane %v475, 1
    %v477 = vadd.f32 %v475, %v476
    %vm478 = vcmp.eq.s32.totalorder %v168, 0
    %vm479 = vcmp.eq.s32.totalorder %v169, 0
    %v480 = vsel %vm478, %v468, 0.0
    %v481 = vsel %vm479, %v477, 0.0
    %v482 = vlaneseq
    %v483 = vshrl.u32 %v482, 7
    %v484 = vsub.s32 1, %v483
    %v485 = vrot.slane %v370, %v484
    %v486 = vlaneseq
    %v487 = vshrl.u32 %v486, 7
    %v488 = vsub.s32 1, %v487
    %v489 = vrot.slane %v371, %v488
    %v490 = vmul.f32 %v485, %v372
    %v491 = vmul.f32 %v485, %v373
    %v492 = vmul.f32 %v489, %v372
    %v493 = vmul.f32 %v489, %v373
    %v494 = vmul.f32 %v490, 1.442695
    %v495 = vpow.pop %v494
    %v496 = vmul.f32 %v491, 1.442695
    %v497 = vpow.pop %v496
    %v498 = vmul.f32 %v492, 1.442695
    %v499 = vpow.pop %v498
    %v500 = vmul.f32 %v493, 1.442695
    %v501 = vpow.pop %v500
    %v502 = vlaneseq
    %v503 = vshrl.u32 %v502, 7
    %v504 = vsub.s32 1, %v503
    %v505 = vrot.slane %v329, %v504
    %s507 = sor.u32 256, 64
    %508 = vbcast.lane.b32.xlu0 %v505, %s507
    %v509 = vpop.permute.xlu0 %508
    %s511 = sor.u32 256, 72
    %512 = vbcast.lane.b32.xlu0 %v505, %s511
    %v513 = vpop.permute.xlu0 %512
    %v514 = vlaneseq
    %v515 = vshrl.u32 %v514, 7
    %v516 = vsub.s32 1, %v515
    %v517 = vrot.slane %v332, %v516
    %s519 = sor.u32 256, 64
    %520 = vbcast.lane.b32.xlu0 %v517, %s519
    %v521 = vpop.permute.xlu0 %520
    %s523 = sor.u32 256, 72
    %524 = vbcast.lane.b32.xlu0 %v517, %s523
    %v525 = vpop.permute.xlu0 %524
    %v526 = vlaneseq
    %v527 = vshrl.u32 %v526, 7
    %v528 = vsub.s32 1, %v527
    %v529 = vrot.slane %v374, %v528
    %v530 = vlaneseq
    %v531 = vshrl.u32 %v530, 7
    %v532 = vsub.s32 1, %v531
    %v533 = vrot.slane %v375, %v532
    %v534 = vmul.f32 %v509, %v529
    %v535 = vmul.f32 %v513, %v529
    %v536 = vmul.f32 %v521, %v533
    %v537 = vmul.f32 %v525, %v533
    %v538 = vmul.f32 %v495, %v436
    %v539 = vmul.f32 %v497, %v437
    %v540 = vmul.f32 %v499, %v438
    %v541 = vmul.f32 %v501, %v439
    %v542 = vadd.f32 %v538, %v534
    %v543 = vadd.f32 %v539, %v535
    %v544 = vadd.f32 %v540, %v536
    %v545 = vadd.f32 %v541, %v537
    %s547 = sor.u32 256, 80
    %548 = vbcast.lane.b32.xlu0 %v505, %s547
    %v549 = vpop.permute.xlu0 %548
    %s551 = sor.u32 256, 88
    %552 = vbcast.lane.b32.xlu0 %v505, %s551
    %v553 = vpop.permute.xlu0 %552
    %s555 = sor.u32 256, 80
    %556 = vbcast.lane.b32.xlu0 %v517, %s555
    %v557 = vpop.permute.xlu0 %556
    %s559 = sor.u32 256, 88
    %560 = vbcast.lane.b32.xlu0 %v517, %s559
    %v561 = vpop.permute.xlu0 %560
    %v562 = vmul.f32 %v542, %v549
    %v563 = vmul.f32 %v543, %v553
    %v564 = vmul.f32 %v544, %v557
    %v565 = vmul.f32 %v545, %v561
    %v566 = vsel %vm290, %v562, 0.0
    %v567 = vsel %vm290, %v563, 0.0
    %v568 = vadd.f32 %v566, %v567
    %v569 = vrot.slane %v568, 4
    %v570 = vadd.f32 %v568, %v569
    %v571 = vrot.slane %v570, 2
    %v572 = vadd.f32 %v570, %v571
    %v573 = vrot.slane %v572, 1
    %v574 = vadd.f32 %v572, %v573
    %v575 = vsel %vm290, %v564, 0.0
    %v576 = vsel %vm290, %v565, 0.0
    %v577 = vadd.f32 %v575, %v576
    %v578 = vrot.slane %v577, 4
    %v579 = vadd.f32 %v577, %v578
    %v580 = vrot.slane %v579, 2
    %v581 = vadd.f32 %v579, %v580
    %v582 = vrot.slane %v581, 1
    %v583 = vadd.f32 %v581, %v582
    %vm584 = vcmp.eq.s32.totalorder %v168, 1
    %vm585 = vcmp.eq.s32.totalorder %v169, 1
    %v586 = vsel %vm584, %v574, %v480
    %v587 = vsel %vm585, %v583, %v481
    %v588 = vlaneseq
    %v589 = vshrl.u32 %v588, 7
    %v590 = vsub.s32 2, %v589
    %v591 = vrot.slane %v370, %v590
    %v592 = vlaneseq
    %v593 = vshrl.u32 %v592, 7
    %v594 = vsub.s32 2, %v593
    %v595 = vrot.slane %v371, %v594
    %v596 = vmul.f32 %v591, %v372
    %v597 = vmul.f32 %v591, %v373
    %v598 = vmul.f32 %v595, %v372
    %v599 = vmul.f32 %v595, %v373
    %v600 = vmul.f32 %v596, 1.442695
    %v601 = vpow.pop %v600
    %v602 = vmul.f32 %v597, 1.442695
    %v603 = vpow.pop %v602
    %v604 = vmul.f32 %v598, 1.442695
    %v605 = vpow.pop %v604
    %v606 = vmul.f32 %v599, 1.442695
    %v607 = vpow.pop %v606
    %v608 = vlaneseq
    %v609 = vshrl.u32 %v608, 7
    %v610 = vsub.s32 2, %v609
    %v611 = vrot.slane %v329, %v610
    %s613 = sor.u32 256, 64
    %614 = vbcast.lane.b32.xlu0 %v611, %s613
    %v615 = vpop.permute.xlu0 %614
    %s617 = sor.u32 256, 72
    %618 = vbcast.lane.b32.xlu0 %v611, %s617
    %v619 = vpop.permute.xlu0 %618
    %v620 = vlaneseq
    %v621 = vshrl.u32 %v620, 7
    %v622 = vsub.s32 2, %v621
    %v623 = vrot.slane %v332, %v622
    %s625 = sor.u32 256, 64
    %626 = vbcast.lane.b32.xlu0 %v623, %s625
    %v627 = vpop.permute.xlu0 %626
    %s629 = sor.u32 256, 72
    %630 = vbcast.lane.b32.xlu0 %v623, %s629
    %v631 = vpop.permute.xlu0 %630
    %v632 = vlaneseq
    %v633 = vshrl.u32 %v632, 7
    %v634 = vsub.s32 2, %v633
    %v635 = vrot.slane %v374, %v634
    %v636 = vlaneseq
    %v637 = vshrl.u32 %v636, 7
    %v638 = vsub.s32 2, %v637
    %v639 = vrot.slane %v375, %v638
    %v640 = vmul.f32 %v615, %v635
    %v641 = vmul.f32 %v619, %v635
    %v642 = vmul.f32 %v627, %v639
    %v643 = vmul.f32 %v631, %v639
    %v644 = vmul.f32 %v601, %v542
    %v645 = vmul.f32 %v603, %v543
    %v646 = vmul.f32 %v605, %v544
    %v647 = vmul.f32 %v607, %v545
    %v648 = vadd.f32 %v644, %v640
    %v649 = vadd.f32 %v645, %v641
    %v650 = vadd.f32 %v646, %v642
    %v651 = vadd.f32 %v647, %v643
    %s653 = sor.u32 256, 80
    %654 = vbcast.lane.b32.xlu0 %v611, %s653
    %v655 = vpop.permute.xlu0 %654
    %s657 = sor.u32 256, 88
    %658 = vbcast.lane.b32.xlu0 %v611, %s657
    %v659 = vpop.permute.xlu0 %658
    %s661 = sor.u32 256, 80
    %662 = vbcast.lane.b32.xlu0 %v623, %s661
    %v663 = vpop.permute.xlu0 %662
    %s665 = sor.u32 256, 88
    %666 = vbcast.lane.b32.xlu0 %v623, %s665
    %v667 = vpop.permute.xlu0 %666
    %v668 = vmul.f32 %v648, %v655
    %v669 = vmul.f32 %v649, %v659
    %v670 = vmul.f32 %v650, %v663
    %v671 = vmul.f32 %v651, %v667
    %v672 = vsel %vm290, %v668, 0.0
    %v673 = vsel %vm290, %v669, 0.0
    %v674 = vadd.f32 %v672, %v673
    %v675 = vrot.slane %v674, 4
    %v676 = vadd.f32 %v674, %v675
    %v677 = vrot.slane %v676, 2
    %v678 = vadd.f32 %v676, %v677
    %v679 = vrot.slane %v678, 1
    %v680 = vadd.f32 %v678, %v679
    %v681 = vsel %vm290, %v670, 0.0
    %v682 = vsel %vm290, %v671, 0.0
    %v683 = vadd.f32 %v681, %v682
    %v684 = vrot.slane %v683, 4
    %v685 = vadd.f32 %v683, %v684
    %v686 = vrot.slane %v685, 2
    %v687 = vadd.f32 %v685, %v686
    %v688 = vrot.slane %v687, 1
    %v689 = vadd.f32 %v687, %v688
    %vm690 = vcmp.eq.s32.totalorder %v168, 2
    %vm691 = vcmp.eq.s32.totalorder %v169, 2
    %v692 = vsel %vm690, %v680, %v586
    %v693 = vsel %vm691, %v689, %v587
    %v694 = vlaneseq
    %v695 = vshrl.u32 %v694, 7
    %v696 = vsub.s32 3, %v695
    %v697 = vrot.slane %v370, %v696
    %v698 = vlaneseq
    %v699 = vshrl.u32 %v698, 7
    %v700 = vsub.s32 3, %v699
    %v701 = vrot.slane %v371, %v700
    %v702 = vmul.f32 %v697, %v372
    %v703 = vmul.f32 %v697, %v373
    %v704 = vmul.f32 %v701, %v372
    %v705 = vmul.f32 %v701, %v373
    %v706 = vmul.f32 %v702, 1.442695
    %v707 = vpow.pop %v706
    %v708 = vmul.f32 %v703, 1.442695
    %v709 = vpow.pop %v708
    %v710 = vmul.f32 %v704, 1.442695
    %v711 = vpow.pop %v710
    %v712 = vmul.f32 %v705, 1.442695
    %v713 = vpow.pop %v712
    %v714 = vlaneseq
    %v715 = vshrl.u32 %v714, 7
    %v716 = vsub.s32 3, %v715
    %v717 = vrot.slane %v329, %v716
    %s719 = sor.u32 256, 64
    %720 = vbcast.lane.b32.xlu0 %v717, %s719
    %v721 = vpop.permute.xlu0 %720
    %s723 = sor.u32 256, 72
    %724 = vbcast.lane.b32.xlu0 %v717, %s723
    %v725 = vpop.permute.xlu0 %724
    %v726 = vlaneseq
    %v727 = vshrl.u32 %v726, 7
    %v728 = vsub.s32 3, %v727
    %v729 = vrot.slane %v332, %v728
    %s731 = sor.u32 256, 64
    %732 = vbcast.lane.b32.xlu0 %v729, %s731
    %v733 = vpop.permute.xlu0 %732
    %s735 = sor.u32 256, 72
    %736 = vbcast.lane.b32.xlu0 %v729, %s735
    %v737 = vpop.permute.xlu0 %736
    %v738 = vlaneseq
    %v739 = vshrl.u32 %v738, 7
    %v740 = vsub.s32 3, %v739
    %v741 = vrot.slane %v374, %v740
    %v742 = vlaneseq
    %v743 = vshrl.u32 %v742, 7
    %v744 = vsub.s32 3, %v743
    %v745 = vrot.slane %v375, %v744
    %v746 = vmul.f32 %v721, %v741
    %v747 = vmul.f32 %v725, %v741
    %v748 = vmul.f32 %v733, %v745
    %v749 = vmul.f32 %v737, %v745
    %v750 = vmul.f32 %v707, %v648
    %v751 = vmul.f32 %v709, %v649
    %v752 = vmul.f32 %v711, %v650
    %v753 = vmul.f32 %v713, %v651
    %v754 = vadd.f32 %v750, %v746
    %v755 = vadd.f32 %v751, %v747
    %v756 = vadd.f32 %v752, %v748
    %v757 = vadd.f32 %v753, %v749
    %s759 = sor.u32 256, 80
    %760 = vbcast.lane.b32.xlu0 %v717, %s759
    %v761 = vpop.permute.xlu0 %760
    %s763 = sor.u32 256, 88
    %764 = vbcast.lane.b32.xlu0 %v717, %s763
    %v765 = vpop.permute.xlu0 %764
    %s767 = sor.u32 256, 80
    %768 = vbcast.lane.b32.xlu0 %v729, %s767
    %v769 = vpop.permute.xlu0 %768
    %s771 = sor.u32 256, 88
    %772 = vbcast.lane.b32.xlu0 %v729, %s771
    %v773 = vpop.permute.xlu0 %772
    %v774 = vmul.f32 %v754, %v761
    %v775 = vmul.f32 %v755, %v765
    %v776 = vmul.f32 %v756, %v769
    %v777 = vmul.f32 %v757, %v773
    %v778 = vsel %vm290, %v774, 0.0
    %v779 = vsel %vm290, %v775, 0.0
    %v780 = vadd.f32 %v778, %v779
    %v781 = vrot.slane %v780, 4
    %v782 = vadd.f32 %v780, %v781
    %v783 = vrot.slane %v782, 2
    %v784 = vadd.f32 %v782, %v783
    %v785 = vrot.slane %v784, 1
    %v786 = vadd.f32 %v784, %v785
    %v787 = vsel %vm290, %v776, 0.0
    %v788 = vsel %vm290, %v777, 0.0
    %v789 = vadd.f32 %v787, %v788
    %v790 = vrot.slane %v789, 4
    %v791 = vadd.f32 %v789, %v790
    %v792 = vrot.slane %v791, 2
    %v793 = vadd.f32 %v791, %v792
    %v794 = vrot.slane %v793, 1
    %v795 = vadd.f32 %v793, %v794
    %vm796 = vcmp.eq.s32.totalorder %v168, 3
    %vm797 = vcmp.eq.s32.totalorder %v169, 3
    %v798 = vsel %vm796, %v786, %v692
    %v799 = vsel %vm797, %v795, %v693
    %v800 = vlaneseq
    %v801 = vshrl.u32 %v800, 7
    %v802 = vsub.s32 4, %v801
    %v803 = vrot.slane %v370, %v802
    %v804 = vlaneseq
    %v805 = vshrl.u32 %v804, 7
    %v806 = vsub.s32 4, %v805
    %v807 = vrot.slane %v371, %v806
    %v808 = vmul.f32 %v803, %v372
    %v809 = vmul.f32 %v803, %v373
    %v810 = vmul.f32 %v807, %v372
    %v811 = vmul.f32 %v807, %v373
    %v812 = vmul.f32 %v808, 1.442695
    %v813 = vpow.pop %v812
    %v814 = vmul.f32 %v809, 1.442695
    %v815 = vpow.pop %v814
    %v816 = vmul.f32 %v810, 1.442695
    %v817 = vpow.pop %v816
    %v818 = vmul.f32 %v811, 1.442695
    %v819 = vpow.pop %v818
    %v820 = vlaneseq
    %v821 = vshrl.u32 %v820, 7
    %v822 = vsub.s32 4, %v821
    %v823 = vrot.slane %v329, %v822
    %s825 = sor.u32 256, 64
    %826 = vbcast.lane.b32.xlu0 %v823, %s825
    %v827 = vpop.permute.xlu0 %826
    %s829 = sor.u32 256, 72
    %830 = vbcast.lane.b32.xlu0 %v823, %s829
    %v831 = vpop.permute.xlu0 %830
    %v832 = vlaneseq
    %v833 = vshrl.u32 %v832, 7
    %v834 = vsub.s32 4, %v833
    %v835 = vrot.slane %v332, %v834
    %s837 = sor.u32 256, 64
    %838 = vbcast.lane.b32.xlu0 %v835, %s837
    %v839 = vpop.permute.xlu0 %838
    %s841 = sor.u32 256, 72
    %842 = vbcast.lane.b32.xlu0 %v835, %s841
    %v843 = vpop.permute.xlu0 %842
    %v844 = vlaneseq
    %v845 = vshrl.u32 %v844, 7
    %v846 = vsub.s32 4, %v845
    %v847 = vrot.slane %v374, %v846
    %v848 = vlaneseq
    %v849 = vshrl.u32 %v848, 7
    %v850 = vsub.s32 4, %v849
    %v851 = vrot.slane %v375, %v850
    %v852 = vmul.f32 %v827, %v847
    %v853 = vmul.f32 %v831, %v847
    %v854 = vmul.f32 %v839, %v851
    %v855 = vmul.f32 %v843, %v851
    %v856 = vmul.f32 %v813, %v754
    %v857 = vmul.f32 %v815, %v755
    %v858 = vmul.f32 %v817, %v756
    %v859 = vmul.f32 %v819, %v757
    %v860 = vadd.f32 %v856, %v852
    %v861 = vadd.f32 %v857, %v853
    %v862 = vadd.f32 %v858, %v854
    %v863 = vadd.f32 %v859, %v855
    %s865 = sor.u32 256, 80
    %866 = vbcast.lane.b32.xlu0 %v823, %s865
    %v867 = vpop.permute.xlu0 %866
    %s869 = sor.u32 256, 88
    %870 = vbcast.lane.b32.xlu0 %v823, %s869
    %v871 = vpop.permute.xlu0 %870
    %s873 = sor.u32 256, 80
    %874 = vbcast.lane.b32.xlu0 %v835, %s873
    %v875 = vpop.permute.xlu0 %874
    %s877 = sor.u32 256, 88
    %878 = vbcast.lane.b32.xlu0 %v835, %s877
    %v879 = vpop.permute.xlu0 %878
    %v880 = vmul.f32 %v860, %v867
    %v881 = vmul.f32 %v861, %v871
    %v882 = vmul.f32 %v862, %v875
    %v883 = vmul.f32 %v863, %v879
    %v884 = vsel %vm290, %v880, 0.0
    %v885 = vsel %vm290, %v881, 0.0
    %v886 = vadd.f32 %v884, %v885
    %v887 = vrot.slane %v886, 4
    %v888 = vadd.f32 %v886, %v887
    %v889 = vrot.slane %v888, 2
    %v890 = vadd.f32 %v888, %v889
    %v891 = vrot.slane %v890, 1
    %v892 = vadd.f32 %v890, %v891
    %v893 = vsel %vm290, %v882, 0.0
    %v894 = vsel %vm290, %v883, 0.0
    %v895 = vadd.f32 %v893, %v894
    %v896 = vrot.slane %v895, 4
    %v897 = vadd.f32 %v895, %v896
    %v898 = vrot.slane %v897, 2
    %v899 = vadd.f32 %v897, %v898
    %v900 = vrot.slane %v899, 1
    %v901 = vadd.f32 %v899, %v900
    %vm902 = vcmp.eq.s32.totalorder %v168, 4
    %vm903 = vcmp.eq.s32.totalorder %v169, 4
    %v904 = vsel %vm902, %v892, %v798
    %v905 = vsel %vm903, %v901, %v799
    %v906 = vlaneseq
    %v907 = vshrl.u32 %v906, 7
    %v908 = vsub.s32 5, %v907
    %v909 = vrot.slane %v370, %v908
    %v910 = vlaneseq
    %v911 = vshrl.u32 %v910, 7
    %v912 = vsub.s32 5, %v911
    %v913 = vrot.slane %v371, %v912
    %v914 = vmul.f32 %v909, %v372
    %v915 = vmul.f32 %v909, %v373
    %v916 = vmul.f32 %v913, %v372
    %v917 = vmul.f32 %v913, %v373
    %v918 = vmul.f32 %v914, 1.442695
    %v919 = vpow.pop %v918
    %v920 = vmul.f32 %v915, 1.442695
    %v921 = vpow.pop %v920
    %v922 = vmul.f32 %v916, 1.442695
    %v923 = vpow.pop %v922
    %v924 = vmul.f32 %v917, 1.442695
    %v925 = vpow.pop %v924
    %v926 = vlaneseq
    %v927 = vshrl.u32 %v926, 7
    %v928 = vsub.s32 5, %v927
    %v929 = vrot.slane %v329, %v928
    %s931 = sor.u32 256, 64
    %932 = vbcast.lane.b32.xlu0 %v929, %s931
    %v933 = vpop.permute.xlu0 %932
    %s935 = sor.u32 256, 72
    %936 = vbcast.lane.b32.xlu0 %v929, %s935
    %v937 = vpop.permute.xlu0 %936
    %v938 = vlaneseq
    %v939 = vshrl.u32 %v938, 7
    %v940 = vsub.s32 5, %v939
    %v941 = vrot.slane %v332, %v940
    %s943 = sor.u32 256, 64
    %944 = vbcast.lane.b32.xlu0 %v941, %s943
    %v945 = vpop.permute.xlu0 %944
    %s947 = sor.u32 256, 72
    %948 = vbcast.lane.b32.xlu0 %v941, %s947
    %v949 = vpop.permute.xlu0 %948
    %v950 = vlaneseq
    %v951 = vshrl.u32 %v950, 7
    %v952 = vsub.s32 5, %v951
    %v953 = vrot.slane %v374, %v952
    %v954 = vlaneseq
    %v955 = vshrl.u32 %v954, 7
    %v956 = vsub.s32 5, %v955
    %v957 = vrot.slane %v375, %v956
    %v958 = vmul.f32 %v933, %v953
    %v959 = vmul.f32 %v937, %v953
    %v960 = vmul.f32 %v945, %v957
    %v961 = vmul.f32 %v949, %v957
    %v962 = vmul.f32 %v919, %v860
    %v963 = vmul.f32 %v921, %v861
    %v964 = vmul.f32 %v923, %v862
    %v965 = vmul.f32 %v925, %v863
    %v966 = vadd.f32 %v962, %v958
    %v967 = vadd.f32 %v963, %v959
    %v968 = vadd.f32 %v964, %v960
    %v969 = vadd.f32 %v965, %v961
    %s971 = sor.u32 256, 80
    %972 = vbcast.lane.b32.xlu0 %v929, %s971
    %v973 = vpop.permute.xlu0 %972
    %s975 = sor.u32 256, 88
    %976 = vbcast.lane.b32.xlu0 %v929, %s975
    %v977 = vpop.permute.xlu0 %976
    %s979 = sor.u32 256, 80
    %980 = vbcast.lane.b32.xlu0 %v941, %s979
    %v981 = vpop.permute.xlu0 %980
    %s983 = sor.u32 256, 88
    %984 = vbcast.lane.b32.xlu0 %v941, %s983
    %v985 = vpop.permute.xlu0 %984
    %v986 = vmul.f32 %v966, %v973
    %v987 = vmul.f32 %v967, %v977
    %v988 = vmul.f32 %v968, %v981
    %v989 = vmul.f32 %v969, %v985
    %v990 = vsel %vm290, %v986, 0.0
    %v991 = vsel %vm290, %v987, 0.0
    %v992 = vadd.f32 %v990, %v991
    %v993 = vrot.slane %v992, 4
    %v994 = vadd.f32 %v992, %v993
    %v995 = vrot.slane %v994, 2
    %v996 = vadd.f32 %v994, %v995
    %v997 = vrot.slane %v996, 1
    %v998 = vadd.f32 %v996, %v997
    %v999 = vsel %vm290, %v988, 0.0
    %v1000 = vsel %vm290, %v989, 0.0
    %v1001 = vadd.f32 %v999, %v1000
    %v1002 = vrot.slane %v1001, 4
    %v1003 = vadd.f32 %v1001, %v1002
    %v1004 = vrot.slane %v1003, 2
    %v1005 = vadd.f32 %v1003, %v1004
    %v1006 = vrot.slane %v1005, 1
    %v1007 = vadd.f32 %v1005, %v1006
    %vm1008 = vcmp.eq.s32.totalorder %v168, 5
    %vm1009 = vcmp.eq.s32.totalorder %v169, 5
    %v1010 = vsel %vm1008, %v998, %v904
    %v1011 = vsel %vm1009, %v1007, %v905
    %v1012 = vlaneseq
    %v1013 = vshrl.u32 %v1012, 7
    %v1014 = vsub.s32 6, %v1013
    %v1015 = vrot.slane %v370, %v1014
    %v1016 = vlaneseq
    %v1017 = vshrl.u32 %v1016, 7
    %v1018 = vsub.s32 6, %v1017
    %v1019 = vrot.slane %v371, %v1018
    %v1020 = vmul.f32 %v1015, %v372
    %v1021 = vmul.f32 %v1015, %v373
    %v1022 = vmul.f32 %v1019, %v372
    %v1023 = vmul.f32 %v1019, %v373
    %v1024 = vmul.f32 %v1020, 1.442695
    %v1025 = vpow.pop %v1024
    %v1026 = vmul.f32 %v1021, 1.442695
    %v1027 = vpow.pop %v1026
    %v1028 = vmul.f32 %v1022, 1.442695
    %v1029 = vpow.pop %v1028
    %v1030 = vmul.f32 %v1023, 1.442695
    %v1031 = vpow.pop %v1030
    %v1032 = vlaneseq
    %v1033 = vshrl.u32 %v1032, 7
    %v1034 = vsub.s32 6, %v1033
    %v1035 = vrot.slane %v329, %v1034
    %s1037 = sor.u32 256, 64
    %1038 = vbcast.lane.b32.xlu0 %v1035, %s1037
    %v1039 = vpop.permute.xlu0 %1038
    %s1041 = sor.u32 256, 72
    %1042 = vbcast.lane.b32.xlu0 %v1035, %s1041
    %v1043 = vpop.permute.xlu0 %1042
    %v1044 = vlaneseq
    %v1045 = vshrl.u32 %v1044, 7
    %v1046 = vsub.s32 6, %v1045
    %v1047 = vrot.slane %v332, %v1046
    %s1049 = sor.u32 256, 64
    %1050 = vbcast.lane.b32.xlu0 %v1047, %s1049
    %v1051 = vpop.permute.xlu0 %1050
    %s1053 = sor.u32 256, 72
    %1054 = vbcast.lane.b32.xlu0 %v1047, %s1053
    %v1055 = vpop.permute.xlu0 %1054
    %v1056 = vlaneseq
    %v1057 = vshrl.u32 %v1056, 7
    %v1058 = vsub.s32 6, %v1057
    %v1059 = vrot.slane %v374, %v1058
    %v1060 = vlaneseq
    %v1061 = vshrl.u32 %v1060, 7
    %v1062 = vsub.s32 6, %v1061
    %v1063 = vrot.slane %v375, %v1062
    %v1064 = vmul.f32 %v1039, %v1059
    %v1065 = vmul.f32 %v1043, %v1059
    %v1066 = vmul.f32 %v1051, %v1063
    %v1067 = vmul.f32 %v1055, %v1063
    %v1068 = vmul.f32 %v1025, %v966
    %v1069 = vmul.f32 %v1027, %v967
    %v1070 = vmul.f32 %v1029, %v968
    %v1071 = vmul.f32 %v1031, %v969
    %v1072 = vadd.f32 %v1068, %v1064
    %v1073 = vadd.f32 %v1069, %v1065
    %v1074 = vadd.f32 %v1070, %v1066
    %v1075 = vadd.f32 %v1071, %v1067
    %s1077 = sor.u32 256, 80
    %1078 = vbcast.lane.b32.xlu0 %v1035, %s1077
    %v1079 = vpop.permute.xlu0 %1078
    %s1081 = sor.u32 256, 88
    %1082 = vbcast.lane.b32.xlu0 %v1035, %s1081
    %v1083 = vpop.permute.xlu0 %1082
    %s1085 = sor.u32 256, 80
    %1086 = vbcast.lane.b32.xlu0 %v1047, %s1085
    %v1087 = vpop.permute.xlu0 %1086
    %s1089 = sor.u32 256, 88
    %1090 = vbcast.lane.b32.xlu0 %v1047, %s1089
    %v1091 = vpop.permute.xlu0 %1090
    %v1092 = vmul.f32 %v1072, %v1079
    %v1093 = vmul.f32 %v1073, %v1083
    %v1094 = vmul.f32 %v1074, %v1087
    %v1095 = vmul.f32 %v1075, %v1091
    %v1096 = vsel %vm290, %v1092, 0.0
    %v1097 = vsel %vm290, %v1093, 0.0
    %v1098 = vadd.f32 %v1096, %v1097
    %v1099 = vrot.slane %v1098, 4
    %v1100 = vadd.f32 %v1098, %v1099
    %v1101 = vrot.slane %v1100, 2
    %v1102 = vadd.f32 %v1100, %v1101
    %v1103 = vrot.slane %v1102, 1
    %v1104 = vadd.f32 %v1102, %v1103
    %v1105 = vsel %vm290, %v1094, 0.0
    %v1106 = vsel %vm290, %v1095, 0.0
    %v1107 = vadd.f32 %v1105, %v1106
    %v1108 = vrot.slane %v1107, 4
    %v1109 = vadd.f32 %v1107, %v1108
    %v1110 = vrot.slane %v1109, 2
    %v1111 = vadd.f32 %v1109, %v1110
    %v1112 = vrot.slane %v1111, 1
    %v1113 = vadd.f32 %v1111, %v1112
    %vm1114 = vcmp.eq.s32.totalorder %v168, 6
    %vm1115 = vcmp.eq.s32.totalorder %v169, 6
    %v1116 = vsel %vm1114, %v1104, %v1010
    %v1117 = vsel %vm1115, %v1113, %v1011
    %v1118 = vlaneseq
    %v1119 = vshrl.u32 %v1118, 7
    %v1120 = vsub.s32 7, %v1119
    %v1121 = vrot.slane %v370, %v1120
    %v1122 = vlaneseq
    %v1123 = vshrl.u32 %v1122, 7
    %v1124 = vsub.s32 7, %v1123
    %v1125 = vrot.slane %v371, %v1124
    %v1126 = vmul.f32 %v1121, %v372
    %v1127 = vmul.f32 %v1121, %v373
    %v1128 = vmul.f32 %v1125, %v372
    %v1129 = vmul.f32 %v1125, %v373
    %v1130 = vmul.f32 %v1126, 1.442695
    %v1131 = vpow.pop %v1130
    %v1132 = vmul.f32 %v1127, 1.442695
    %v1133 = vpow.pop %v1132
    %v1134 = vmul.f32 %v1128, 1.442695
    %v1135 = vpow.pop %v1134
    %v1136 = vmul.f32 %v1129, 1.442695
    %v1137 = vpow.pop %v1136
    %v1138 = vlaneseq
    %v1139 = vshrl.u32 %v1138, 7
    %v1140 = vsub.s32 7, %v1139
    %v1141 = vrot.slane %v329, %v1140
    %s1143 = sor.u32 256, 64
    %1144 = vbcast.lane.b32.xlu0 %v1141, %s1143
    %v1145 = vpop.permute.xlu0 %1144
    %s1147 = sor.u32 256, 72
    %1148 = vbcast.lane.b32.xlu0 %v1141, %s1147
    %v1149 = vpop.permute.xlu0 %1148
    %v1150 = vlaneseq
    %v1151 = vshrl.u32 %v1150, 7
    %v1152 = vsub.s32 7, %v1151
    %v1153 = vrot.slane %v332, %v1152
    %s1155 = sor.u32 256, 64
    %1156 = vbcast.lane.b32.xlu0 %v1153, %s1155
    %v1157 = vpop.permute.xlu0 %1156
    %s1159 = sor.u32 256, 72
    %1160 = vbcast.lane.b32.xlu0 %v1153, %s1159
    %v1161 = vpop.permute.xlu0 %1160
    %v1162 = vlaneseq
    %v1163 = vshrl.u32 %v1162, 7
    %v1164 = vsub.s32 7, %v1163
    %v1165 = vrot.slane %v374, %v1164
    %v1166 = vlaneseq
    %v1167 = vshrl.u32 %v1166, 7
    %v1168 = vsub.s32 7, %v1167
    %v1169 = vrot.slane %v375, %v1168
    %v1170 = vmul.f32 %v1145, %v1165
    %v1171 = vmul.f32 %v1149, %v1165
    %v1172 = vmul.f32 %v1157, %v1169
    %v1173 = vmul.f32 %v1161, %v1169
    %v1174 = vmul.f32 %v1131, %v1072
    %v1175 = vmul.f32 %v1133, %v1073
    %v1176 = vmul.f32 %v1135, %v1074
    %v1177 = vmul.f32 %v1137, %v1075
    %v1178 = vadd.f32 %v1174, %v1170
    %v1179 = vadd.f32 %v1175, %v1171
    %v1180 = vadd.f32 %v1176, %v1172
    %v1181 = vadd.f32 %v1177, %v1173
    %s1183 = sor.u32 256, 80
    %1184 = vbcast.lane.b32.xlu0 %v1141, %s1183
    %v1185 = vpop.permute.xlu0 %1184
    %s1187 = sor.u32 256, 88
    %1188 = vbcast.lane.b32.xlu0 %v1141, %s1187
    %v1189 = vpop.permute.xlu0 %1188
    %s1191 = sor.u32 256, 80
    %1192 = vbcast.lane.b32.xlu0 %v1153, %s1191
    %v1193 = vpop.permute.xlu0 %1192
    %s1195 = sor.u32 256, 88
    %1196 = vbcast.lane.b32.xlu0 %v1153, %s1195
    %v1197 = vpop.permute.xlu0 %1196
    %v1198 = vmul.f32 %v1178, %v1185
    %v1199 = vmul.f32 %v1179, %v1189
    %v1200 = vmul.f32 %v1180, %v1193
    %v1201 = vmul.f32 %v1181, %v1197
    %v1202 = vsel %vm290, %v1198, 0.0
    %v1203 = vsel %vm290, %v1199, 0.0
    %v1204 = vadd.f32 %v1202, %v1203
    %v1205 = vrot.slane %v1204, 4
    %v1206 = vadd.f32 %v1204, %v1205
    %v1207 = vrot.slane %v1206, 2
    %v1208 = vadd.f32 %v1206, %v1207
    %v1209 = vrot.slane %v1208, 1
    %v1210 = vadd.f32 %v1208, %v1209
    %v1211 = vsel %vm290, %v1200, 0.0
    %v1212 = vsel %vm290, %v1201, 0.0
    %v1213 = vadd.f32 %v1211, %v1212
    %v1214 = vrot.slane %v1213, 4
    %v1215 = vadd.f32 %v1213, %v1214
    %v1216 = vrot.slane %v1215, 2
    %v1217 = vadd.f32 %v1215, %v1216
    %v1218 = vrot.slane %v1217, 1
    %v1219 = vadd.f32 %v1217, %v1218
    %vm1220 = vcmp.eq.s32.totalorder %v168, 7
    %vm1221 = vcmp.eq.s32.totalorder %v169, 7
    %v1222 = vsel %vm1220, %v1210, %v1116
    %v1223 = vsel %vm1221, %v1219, %v1117
    %v1224 = vld [vmem:[#allocation7] sm:$0x1]
    %v1226 = vlaneseq
    %v1227 = vshrl.u32 %v1226, 7
    %v1228 = vsub.s32 0, %v1227
    %v1229 = vrot.slane %v1224, %v1228
    %v1231 = vmul.f32 %v255, %v1229
    %v1232 = vmul.f32 %v256, %v1229
    %v1233 = vadd.f32 %v1222, %v1231
    %v1234 = vadd.f32 %v1223, %v1232
    %v1235 = vsub.f32 0.0, %v137
    %v1236 = vsub.f32 0.0, %v140
    %v1237 = vmul.f32 %v1235, 1.442695
    %v1238 = vpow.pop %v1237
    %v1239 = vmul.f32 %v1236, 1.442695
    %v1240 = vpow.pop %v1239
    %v1241 = vadd.f32 %v1238, 1.0
    %v1242 = vadd.f32 %v1240, 1.0
    %v1243 = vrcp.pop %v1241
    %v1244 = vrcp.pop %v1242
    %v1245 = vmul.f32 %v137, %v1243
    %v1246 = vmul.f32 %v140, %v1244
    %1249 = vrot.lane.b32.xlu0 %v1245, 64
    %v1250 = vpop.permute.xlu0 %1249
    %1251 = vrot.lane.b32.xlu0 %v1246, 64
    %v1252 = vpop.permute.xlu0 %1251
    %v1255 = vmul.f32 %v1233, %v1250
    %v1256 = vmul.f32 %v1234, %v1252
    %v1257 = vpack.c.bf16 %v1256, %v1255
    %v1258 = vld [vmem:[%s9] sm:$0xf]
    %v1259 = vld [vmem:[%s9 + $0x4] sm:$0xf]
    %v1260 = vld [vmem:[%s9 + $0x8] sm:$0xf]
    %v1261 = vld [vmem:[%s9 + $0xc] sm:$0xf]
    %v1262 = vld [vmem:[%s9 + $0x10] sm:$0xf]
    %v1263 = vld [vmem:[%s9 + $0x14] sm:$0xf]
    %v1264 = vld [vmem:[%s9 + $0x18] sm:$0xf]
    %v1265 = vld [vmem:[%s9 + $0x1c] sm:$0xf]
    %v1274 = vunpack.c.l.b16 %v1258
    %v1275 = vunpack.c.l.b16 %v1259
    %v1276 = vunpack.c.l.b16 %v1260
    %v1277 = vunpack.c.l.b16 %v1261
    %v1278 = vunpack.c.l.b16 %v1262
    %v1279 = vunpack.c.l.b16 %v1263
    %v1280 = vunpack.c.l.b16 %v1264
    %v1281 = vunpack.c.l.b16 %v1265
    %v1282 = vpack.c.b16 %v1275, %v1274
    %v1283 = vpack.c.b16 %v1277, %v1276
    %v1284 = vpack.c.b16 %v1279, %v1278
    %v1285 = vpack.c.b16 %v1281, %v1280
    %v1291 = vsel %vm290, %v1257, 0
    %1293 = vmatprep.subr.bf16.mxu0 0
    %1294 = vmatpush1.bf16.msra.mxu0 %v1282
    %1295 = vmatprep.subr.bf16.mxu0 0
    %1296 = vmatpush1.bf16.msra.mxu0 %v1283
    %1297 = vmatprep.subr.bf16.mxu0 0
    %1298 = vmatpush1.bf16.msra.mxu0 %v1284
    %1299 = vmatprep.subr.bf16.mxu0 0
    %1300 = vmatpush1.bf16.msra.mxu0 %v1285
    %1301 = vmatprep.subr.bf16.mxu0 0
    %1302 = vmatpush1.bf16.msra.mxu0 0
    %1303 = vmatprep.subr.bf16.mxu0 0
    %1304 = vmatpush1.bf16.msra.mxu0 0
    %1305 = vmatprep.subr.bf16.mxu0 0
    %1306 = vmatpush1.bf16.msra.mxu0 0
    %1307 = vmatprep.subr.bf16.mxu0 0
    %1308 = vmatpush1.bf16.msra.mxu0 0
    %1309 = vmatprep.subr.bf16.mxu0 0
    %1310 = vmatpush1.bf16.msra.mxu0 0
    %1311 = vmatprep.subr.bf16.mxu0 0
    %1312 = vmatpush1.bf16.msra.mxu0 0
    %1313 = vmatprep.subr.bf16.mxu0 0
    %1314 = vmatpush1.bf16.msra.mxu0 0
    %1315 = vmatprep.subr.bf16.mxu0 0
    %1316 = vmatpush1.bf16.msra.mxu0 0
    %1317 = vmatprep.subr.bf16.mxu0 0
    %1318 = vmatpush1.bf16.msra.mxu0 0
    %1319 = vmatprep.subr.bf16.mxu0 0
    %1320 = vmatpush1.bf16.msra.mxu0 0
    %1321 = vmatprep.subr.bf16.mxu0 0
    %1322 = vmatpush1.bf16.msra.mxu0 0
    %1323 = vmatprep.subr.bf16.mxu0 0
    %1324 = vmatpush1.bf16.msra.mxu0 0
    %1325 = vmatprep.mubr.bf16.mxu0 0
    %1326 = vmatmul.mubr.bf16.gmra.mrb[0].mxu0 %v1291
    %v1327 = vpop.f32.mrb[0].mxu0
    %v1328 = vadd.f32 0.0, %v1327
    %v1329 = vpop.f32.mrb[0].mxu0
    %v1330 = vpop.f32.mrb[0].mxu0
    %v1331 = vadd.f32 0.0, %v1330
    %v1332 = vpop.f32.mrb[0].mxu0
    %1333 = vdwg.mxu0
    %vm1334 = vcmask 261120
    %v1335 = vsel %vm1334, %v1328, 0.0
    %1336 = vadd.xlane.f32.xlu0 %v1335
    %v1337 = vpop.xlane.xlu0 %1336
    %v1338 = vsel %vm1334, %v1331, 0.0
    %1339 = vadd.xlane.f32.xlu0 %v1338
    %v1340 = vpop.xlane.xlu0 %1339
    %v1341 = vrcp.pop 32.0
    %v1342 = vmul.f32 %v1337, %v1341
    %v1343 = vmul.f32 %v1340, %v1341
    %v1344 = vsub.f32 %v1328, %v1342
    %v1345 = vsub.f32 %v1331, %v1343
    %v1346 = vmul.f32 %v1344, %v1344
    %v1347 = vmul.f32 %v1345, %v1345
    %v1348 = vsel %vm1334, %v1346, 0.0
    %1349 = vadd.xlane.f32.xlu0 %v1348
    %v1350 = vpop.xlane.xlu0 %1349
    %v1351 = vsel %vm1334, %v1347, 0.0
    %1352 = vadd.xlane.f32.xlu0 %v1351
    %v1353 = vpop.xlane.xlu0 %1352
    %v1354 = vmul.f32 %v1350, %v1341
    %v1355 = vmul.f32 %v1353, %v1341
    %v1356 = vadd.f32 %v1354, 1e-05
    %v1357 = vadd.f32 %v1355, 1e-05
    %v1358 = vrsqrt.pop %v1356
    %v1359 = vrsqrt.pop %v1357
    %v1360 = vmul.f32 %v1344, %v1358
    %v1361 = vmul.f32 %v1345, %v1359
    %v1362 = vld [vmem:[%s10] sm:$0x1]
    %v1364 = vlaneseq
    %v1365 = vshrl.u32 %v1364, 7
    %v1366 = vsub.s32 0, %v1365
    %v1367 = vrot.slane %v1362, %v1366
    %v1369 = vmul.f32 %v1360, %v1367
    %v1370 = vmul.f32 %v1361, %v1367
    %v1371 = vld [vmem:[%s11] sm:$0x1]
    %v1373 = vlaneseq
    %v1374 = vshrl.u32 %v1373, 7
    %v1375 = vsub.s32 0, %v1374
    %v1376 = vrot.slane %v1371, %v1375
    %v1378 = vadd.f32 %v1369, %v1376
    %v1379 = vadd.f32 %v1370, %v1376
    %1380 = vst.msk [vmem:[#allocation8] sm:$0xff] %vm1334, %v1378
    %1381 = vst.msk [vmem:[#allocation8 + $0x8] sm:$0xff] %vm1334, %v1379
    // Predicated region
    $region62: #{tpu_custom_call.1} parent=1 // pred_check
      _
    $region63: #{tpu_custom_call.1} parent=1 // pred_check_branch
      %1383 = sbr.rel (0) target = $region65
    $region64: #{tpu_custom_call.1} parent=1 // pred_region
      %s1385 = ssub.s32 256, 256
      %1386 = vsyncadd [#allocation4], %s1385
      %s1387 = sshll.u32 [#allocation8], 4
      %s1388 = int_to_ptr.vmem [resolvable:$true] %s1387
      %1393 = dma.vmem_to_hbm [thread:$0]  %s1388, 256, %s12, [#allocation4], 128, 128, 8
    $region65: #{tpu_custom_call.1} parent=1 // pred_fallthru
      _
    // Predicated region
    $region66: #{tpu_custom_call.1} parent=1 // pred_check
      _
    $region67: #{tpu_custom_call.1} parent=1 // pred_check_branch
      %1395 = sbr.rel (0) target = $region69
    $region68: #{tpu_custom_call.1} parent=1 // pred_region
      %1396 = dma.done [#allocation4], 256
    $region69: #{tpu_custom_call.1} parent=1 // pred_fallthru
      _
    %1397 = vsyncpa [#allocation3], 1
    %1398 = vsyncpa [#allocation6], 1
    %1399 = vsyncpa [#allocation4], 1

</llo_original>
